<compile_context>
chip_gen: v7x
topology: tpu7x:2x2x1
jax: 0.10.0
libtpu: 0.0.40
codegen_flags: <defaults>
</compile_context>

<pallas_src>
import functools
import math

import jax
import jax.numpy as jnp
from jax import lax
from jax.experimental import pallas as pl
from jax.experimental.pallas import tpu as pltpu


_CONTRACT_LAST = (((1,), (1,)), ((), ()))   # contract last dims of both operands (x @ w.T)
_TILE_M = 1024                              # projection row tile (mem-bound; big tiles amortize overhead)


def _vmem_limit_bytes():
    """~75% of physical VMEM: 96 MiB on v5e/v6e (128 MiB phys), 48 MiB on v7x (64 MiB phys)."""
    try:
        return int(pltpu.get_tpu_info().vmem_capacity_bytes * 3 // 4)
    except Exception:
        return 48 * 1024 * 1024


# --------------------------------------------------------------------------------------
# Kernels
# --------------------------------------------------------------------------------------
def _dual_proj_kernel(x_ref, w1_ref, w2_ref, *rest, has_bias2, sigmoid2):
    """Two projections sharing one input tile.

    x: (tm, c_in) f32, w1/w2: (N, c_in) bf16, optional b2: (1, N) f32 -> o1, o2: (tm, N) bf16.
    """
    if has_bias2:
        b2_ref, o1_ref, o2_ref = rest
    else:
        o1_ref, o2_ref = rest
        b2_ref = None

    x = x_ref[...].astype(jnp.bfloat16)
    y1 = lax.dot_general(x, w1_ref[...], _CONTRACT_LAST, preferred_element_type=jnp.float32)
    y2 = lax.dot_general(x, w2_ref[...], _CONTRACT_LAST, preferred_element_type=jnp.float32)
    if has_bias2:
        y2 = y2 + b2_ref[...]
    if sigmoid2:
        y2 = jax.nn.sigmoid(y2)
    o1_ref[...] = y1.astype(o1_ref.dtype)
    o2_ref[...] = y2.astype(o2_ref.dtype)


def _attn_gate_out_kernel(q_ref, k_ref, v_ref, g_ref, wo_ref, bo_ref, *rest, n_bias):
    """One (batch, q-tile, head) step: attention + gate + head's output-projection contribution.

    q/g: (1, 1, TQ, C) bf16 (q already scaled), k/v: (1, 1, K, C) bf16,
    wo: (1, c_q, C) bf16 (head h slice of W_o), bo: (1, c_q) f32,
    biases: (1, 1, TQb, Kb) f32 tiles -> out: (1, TQ, c_q) f32, accumulated over the head axis.
    """
    bias_refs = rest[:n_bias]
    o_ref = rest[n_bias]
    h = pl.program_id(2)

    qh = q_ref[0, 0]                   # (TQ, C) bf16, 1/sqrt(C) folded into W_q
    kh = k_ref[0, 0]                   # (K,  C) bf16
    vh = v_ref[0, 0]                   # (K,  C) bf16

    # logits = qh @ kh.T  (contraction on last dims; no transpose materialized)
    logits = lax.dot_general(qh, kh, _CONTRACT_LAST,
                             preferred_element_type=jnp.float32)            # (TQ, K) f32
    for b_ref in bias_refs:
        logits = logits + b_ref[0, 0]                                        # broadcast add

    m = jnp.max(logits, axis=-1, keepdims=True)
    p = jnp.exp(logits - m)
    s = jnp.sum(p, axis=-1, keepdims=True)
    oh = jnp.dot(p.astype(jnp.bfloat16), vh, preferred_element_type=jnp.float32)  # (TQ, C)
    # normalize on the small (TQ, C) output instead of dividing the (TQ, K) weights
    oh = oh * pl.reciprocal(s, approx=True)

    gated = oh.astype(jnp.bfloat16) * g_ref[0, 0]                            # sigmoid gate applied
    contrib = lax.dot_general(gated, wo_ref[0], _CONTRACT_LAST,
                              preferred_element_type=jnp.float32)            # (TQ, c_q) f32

    # Output block is resident across the head axis: accumulate head contributions in place.
    @pl.when(h == 0)
    def _():
        o_ref[0] = bo_ref[...] + contrib

    @pl.when(h != 0)
    def _():
        o_ref[0] = o_ref[0] + contrib


# --------------------------------------------------------------------------------------
# pallas_call wrappers
# --------------------------------------------------------------------------------------
def pallas_dual_proj(x, w1, w2, b2=None, sigmoid2=False, tile_m=_TILE_M):
    """x: (M, c_in) f32, w1/w2: (N, c_in) bf16, b2: (N,)|None -> (o1, o2): (M, N) bf16."""
    M, c_in = x.shape
    N = w1.shape[0]
    tm = min(tile_m, M)
    grid = (pl.cdiv(M, tm),)

    in_specs = [
        pl.BlockSpec((tm, c_in), lambda i: (i, 0)),
        pl.BlockSpec((N, c_in), lambda i: (0, 0)),   # resident across the M grid
        pl.BlockSpec((N, c_in), lambda i: (0, 0)),
    ]
    args = [x, w1, w2]
    if b2 is not None:
        in_specs.append(pl.BlockSpec((1, N), lambda i: (0, 0)))
        args.append(b2.reshape(1, N).astype(jnp.float32))

    kern = functools.partial(_dual_proj_kernel, has_bias2=b2 is not None, sigmoid2=sigmoid2)
    return pl.pallas_call(
        kern,
        out_shape=(jax.ShapeDtypeStruct((M, N), jnp.bfloat16),
                   jax.ShapeDtypeStruct((M, N), jnp.bfloat16)),
        grid=grid,
        in_specs=in_specs,
        out_specs=(pl.BlockSpec((tm, N), lambda i: (i, 0)),
                   pl.BlockSpec((tm, N), lambda i: (i, 0))),
        compiler_params=pltpu.CompilerParams(
            dimension_semantics=("parallel",),
            vmem_limit_bytes=_vmem_limit_bytes()),
    )(*args)


def _choose_tq(Q, K, n_bias):
    """Largest Q tile (multiple of 8, dividing Q) whose (TQ, K) f32 slabs stay under ~12 MiB,
    so the per-step footprint fits v7x's 64 MiB VMEM with headroom."""
    budget = 12 * 1024 * 1024
    bytes_per_row = max(K, 128) * 4 * (1 + 2 * max(n_bias, 1))   # logits + double-buffered bias
    cap = max(8, budget // bytes_per_row)
    for t in (1024, 512, 256, 128, 64, 32, 16, 8):
        if t <= cap and Q % t == 0:
            return t
    return Q


def _make_bias_spec(shape, Q, tq):
    """BlockSpec for an un-broadcast bias (Bb, Hb, Qb, Kb): tiled along Q, sliced per head."""
    Bb, Hb, Qb, Kb = (int(d) for d in shape)
    bq = tq if (Qb == Q and Qb != 1) else Qb

    def idx(b, qi, h):
        return (b if Bb != 1 else 0,
                h if Hb != 1 else 0,
                qi if Qb != 1 else 0,
                0)

    return pl.BlockSpec((1, 1, bq, Kb), idx)


def pallas_attn_gate_out(q, k, v, gate, w_o_r, b_o, biases, *, tq=None):
    """q/gate: (B, H, Q, C) bf16, k/v: (B, H, K, C) bf16, w_o_r: (H, c_q, C) bf16,
    b_o: (1, c_q) f32, biases: list of (Bb, Hb, Qb, Kb) f32 (un-broadcast) -> (B, Q, c_q) f32."""
    B, H, Q, C = q.shape
    K = k.shape[2]
    c_q = w_o_r.shape[1]
    n_bias = len(biases)
    if tq is None:
        tq = _choose_tq(Q, K, n_bias)

    bias_specs = [_make_bias_spec(bb.shape, Q, tq) for bb in biases]
    kern = functools.partial(_attn_gate_out_kernel, n_bias=n_bias)

    # NOTE: in production configs keep c_q and C multiples of 128 where possible so the output /
    # intermediate stores stay lane-dense (unmasked vst).
    return pl.pallas_call(
        kern,
        out_shape=jax.ShapeDtypeStruct((B, Q, c_q), jnp.float32),
        grid=(B, pl.cdiv(Q, tq), H),                       # head axis last = output reduction
        in_specs=[
            pl.BlockSpec((1, 1, tq, C), lambda b, qi, h: (b, h, qi, 0)),   # q
            pl.BlockSpec((1, 1, K, C), lambda b, qi, h: (b, h, 0, 0)),     # k
            pl.BlockSpec((1, 1, K, C), lambda b, qi, h: (b, h, 0, 0)),     # v
            pl.BlockSpec((1, 1, tq, C), lambda b, qi, h: (b, h, qi, 0)),   # gate
            pl.BlockSpec((1, c_q, C), lambda b, qi, h: (h, 0, 0)),         # W_o head slice
            pl.BlockSpec((1, c_q), lambda b, qi, h: (0, 0)),               # b_o (resident)
            *bias_specs,
        ],
        out_specs=pl.BlockSpec((1, tq, c_q), lambda b, qi, h: (b, qi, 0)),  # resident across h
        compiler_params=pltpu.CompilerParams(
            dimension_semantics=("parallel", "parallel", "arbitrary"),
            vmem_limit_bytes=_vmem_limit_bytes()),
    )(q, k, v, gate, w_o_r, b_o, *biases)


# --------------------------------------------------------------------------------------
# Full Attention forward (gating=True path)
# --------------------------------------------------------------------------------------
def attention_forward(params, q_x, kv_x, biases=None):
    """q_x: (B, Q, c_q) f32, kv_x: (B, K, c_k) f32, biases: list broadcastable to (B, H, Q, K).
    Returns (B, Q, c_q) f32."""
    B, Q, c_q = q_x.shape
    K = kv_x.shape[1]
    H, C = params["no_heads"], params["c_hidden"]
    scale = 1.0 / math.sqrt(C)

    qx_flat = q_x.reshape(B * Q, c_q)
    kvx_flat = kv_x.reshape(B * K, -1)

    # Fold the 1/sqrt(c_hidden) scale into W_q once; cast weights to bf16 once (tiny XLA ops).
    w_q = (params["w_q"].astype(jnp.float32) * scale).astype(jnp.bfloat16)
    w_g = params["w_g"].astype(jnp.bfloat16)
    w_k = params["w_k"].astype(jnp.bfloat16)
    w_v = params["w_v"].astype(jnp.bfloat16)
    # W_o reshaped to (H, c_q, C): per-head slices feed the in-kernel output-proj accumulation.
    w_o_r = params["w_o"].astype(jnp.bfloat16).reshape(c_q, H, C).transpose(1, 0, 2)

    # Fused projections: (q, sigmoid-gate) from q_x, (k, v) from kv_x.
    q_flat, gate_flat = pallas_dual_proj(qx_flat, w_q, w_g, b2=params["b_g"], sigmoid2=True)
    k_flat, v_flat = pallas_dual_proj(kvx_flat, w_k, w_v)

    # One-time XLA relayout of the bf16 intermediates to the flash-style (B, H, S, C) layout so
    # every attention block is a contiguous DMA and the kernel does zero lane slicing / relayout.
    q = q_flat.reshape(B, Q, H, C).transpose(0, 2, 1, 3)
    gate = gate_flat.reshape(B, Q, H, C).transpose(0, 2, 1, 3)
    k = k_flat.reshape(B, K, H, C).transpose(0, 2, 1, 3)
    v = v_flat.reshape(B, K, H, C).transpose(0, 2, 1, 3)

    # Biases stay un-broadcast; only pad to rank 4. They are tiled per head / per Q tile by the
    # BlockSpecs and summed inside the kernel (kept f32 for mask-bias precision).
    biases_norm = []
    if biases:
        for b in biases:
            b = jnp.asarray(b, jnp.float32)
            if b.ndim < 4:
                b = b.reshape((1,) * (4 - b.ndim) + b.shape)
            biases_norm.append(b)

    b_o = params["b_o"].reshape(1, c_q).astype(jnp.float32)
    return pallas_attn_gate_out(q, k, v, gate, w_o_r, b_o, biases_norm)


# --------------------------------------------------------------------------------------
# Pure-JAX reference (mirrors the PyTorch forward, full f32)
# --------------------------------------------------------------------------------------
def attention_reference(params, q_x, kv_x, biases=None):
    B, Q, c_q = q_x.shape
    K = kv_x.shape[1]
    H, C = params["no_heads"], params["c_hidden"]

    q = q_x @ params["w_q"].T
    k = kv_x @ params["w_k"].T
    v = kv_x @ params["w_v"].T
    q = q.reshape(B, Q, H, C).transpose(0, 2, 1, 3) / math.sqrt(C)
    k = k.reshape(B, K, H, C).transpose(0, 2, 1, 3)
    v = v.reshape(B, K, H, C).transpose(0, 2, 1, 3)

    a = jnp.einsum("bhqc,bhkc->bhqk", q, k)
    if biases is not None:
        for b in biases:
            a = a + b
    a = jax.nn.softmax(a, axis=-1)
    o = jnp.einsum("bhqk,bhkc->bhqc", a, v)
    o = o.transpose(0, 2, 1, 3)                              # (B, Q, H, C)

    g = jax.nn.sigmoid(q_x @ params["w_g"].T + params["b_g"]).reshape(B, Q, H, C)
    o = o * g
    o = o.reshape(B, Q, H * C)
    return o @ params["w_o"].T + params["b_o"]


# --------------------------------------------------------------------------------------
if __name__ == "__main__":
    B, Q, K = 2, 16, 16
    c_q = c_k = c_v = 16
    c_hidden, no_heads = 8, 4

    key = jax.random.PRNGKey(0)
    ks = jax.random.split(key, 9)

    # deterministic synthetic parameters (module init zeros w_o / w_g, which would make the
    # test trivial, so use small normals)
    params = {
        "c_hidden": c_hidden,
        "no_heads": no_heads,
        "w_q": 0.1 * jax.random.normal(ks[0], (c_hidden * no_heads, c_q), jnp.float32),
        "w_k": 0.1 * jax.random.normal(ks[1], (c_hidden * no_heads, c_k), jnp.float32),
        "w_v": 0.1 * jax.random.normal(ks[2], (c_hidden * no_heads, c_v), jnp.float32),
        "w_g": 0.1 * jax.random.normal(ks[3], (c_hidden * no_heads, c_q), jnp.float32),
        "b_g": 0.1 * jax.random.normal(ks[4], (c_hidden * no_heads,), jnp.float32),
        "w_o": 0.1 * jax.random.normal(ks[5], (c_q, c_hidden * no_heads), jnp.float32),
        "b_o": 0.1 * jax.random.normal(ks[6], (c_q,), jnp.float32),
    }

    q_x = jax.random.normal(ks[7], (B, Q, c_q), jnp.float32)
    kv_x = jax.random.normal(ks[8], (B, K, c_k), jnp.float32)
    # one bias, broadcastable to (B, H, Q, K) — a pairwise-bias-like term (NOT broadcast to H)
    bias = 0.5 * jax.random.normal(jax.random.PRNGKey(42), (B, 1, Q, K), jnp.float32)

    fwd = jax.jit(lambda qx, kvx, b: attention_forward(params, qx, kvx, biases=[b]))
    out = jax.block_until_ready(fwd(q_x, kv_x, bias))

    ref = attention_reference(params, q_x, kv_x, biases=[bias])
    assert out.shape == (B, Q, c_q), out.shape
    # bf16 MXU operands + approximate reciprocal -> compare at bf16-level tolerance
    max_err = float(jnp.max(jnp.abs(out - ref)))
    assert jnp.allclose(out, ref, atol=2e-2, rtol=2e-2), max_err

    print("KERNEL_OK")
</pallas_src>

<mosaic_0001>
module attributes {stable_mosaic.version = 11 : i64} {
  func.func @_dual_proj_kernel(%arg0: i32, %arg1: memref<32x16xf32, #tpu.memory_space<vmem>>, %arg2: memref<32x16xbf16, #tpu.memory_space<vmem>>, %arg3: memref<32x16xbf16, #tpu.memory_space<vmem>>, %arg4: memref<1x32xf32, #tpu.memory_space<vmem>>, %arg5: memref<32x32xbf16, #tpu.memory_space<vmem>>, %arg6: memref<32x32xbf16, #tpu.memory_space<vmem>>) attributes {dimension_semantics = [#tpu.dimension_semantics<parallel>], iteration_bounds = array<i64: 1>, scalar_prefetch = 0 : i64, scratch_operands = 0 : i64, tpu.core_type = #tpu.core_type<tc>, window_params = [{transform_indices = @transform_0, window_bounds = array<i64: 32, 16>}, {pipeline_mode = #tpu.pipeline_mode<synchronous>, transform_indices = @transform_1, window_bounds = array<i64: 32, 16>}, {pipeline_mode = #tpu.pipeline_mode<synchronous>, transform_indices = @transform_2, window_bounds = array<i64: 32, 16>}, {pipeline_mode = #tpu.pipeline_mode<synchronous>, transform_indices = @transform_3, window_bounds = array<i64: 1, 32>}, {transform_indices = @transform_4, window_bounds = array<i64: 32, 32>}, {transform_indices = @transform_5, window_bounds = array<i64: 32, 32>}]} {
    %c0 = arith.constant 0 : index
    %c0_0 = arith.constant 0 : index
    %0 = vector.load %arg1[%c0, %c0_0] : memref<32x16xf32, #tpu.memory_space<vmem>>, vector<32x16xf32>
    %1 = arith.truncf %0 : vector<32x16xf32> to vector<32x16xbf16>
    %c0_1 = arith.constant 0 : index
    %c0_2 = arith.constant 0 : index
    %2 = vector.load %arg2[%c0_1, %c0_2] : memref<32x16xbf16, #tpu.memory_space<vmem>>, vector<32x16xbf16>
    %cst = arith.constant dense<0.000000e+00> : vector<32x32xf32>
    %3 = tpu.matmul %1, %2, %cst {dimension_numbers = #tpu.dot_dimension_numbers<[1], [1], [0], [0], [0, 0, 1, 0], [], []>} : vector<32x16xbf16>, vector<32x16xbf16>, vector<32x32xf32> -> vector<32x32xf32>
    %c0_3 = arith.constant 0 : index
    %c0_4 = arith.constant 0 : index
    %4 = vector.load %arg3[%c0_3, %c0_4] : memref<32x16xbf16, #tpu.memory_space<vmem>>, vector<32x16xbf16>
    %cst_5 = arith.constant dense<0.000000e+00> : vector<32x32xf32>
    %5 = tpu.matmul %1, %4, %cst_5 {dimension_numbers = #tpu.dot_dimension_numbers<[1], [1], [0], [0], [0, 0, 1, 0], [], []>} : vector<32x16xbf16>, vector<32x16xbf16>, vector<32x32xf32> -> vector<32x32xf32>
    %c0_6 = arith.constant 0 : index
    %c0_7 = arith.constant 0 : index
    %6 = vector.load %arg4[%c0_6, %c0_7] : memref<1x32xf32, #tpu.memory_space<vmem>>, vector<1x32xf32>
    %7 = vector.broadcast %6 : vector<1x32xf32> to vector<32x32xf32>
    %8 = arith.addf %5, %7 : vector<32x32xf32>
    %9 = arith.negf %8 : vector<32x32xf32>
    %10 = math.exp %9 : vector<32x32xf32>
    %cst_8 = arith.constant 1.000000e+00 : f32
    %11 = vector.broadcast %cst_8 : f32 to vector<32x32xf32>
    %12 = arith.addf %11, %10 : vector<32x32xf32>
    %13 = arith.divf %11, %12 : vector<32x32xf32>
    %14 = arith.truncf %3 : vector<32x32xf32> to vector<32x32xbf16>
    %c0_9 = arith.constant 0 : index
    %c0_10 = arith.constant 0 : index
    %15 = vector.load %arg5[%c0_9, %c0_10] : memref<32x32xbf16, #tpu.memory_space<vmem>>, vector<32x32xbf16>
    tpu.vector_store %arg5[%c0_9, %c0_10], %14 {strides = array<i32>} : memref<32x32xbf16, #tpu.memory_space<vmem>>, vector<32x32xbf16>,
    %16 = arith.truncf %13 : vector<32x32xf32> to vector<32x32xbf16>
    %c0_11 = arith.constant 0 : index
    %c0_12 = arith.constant 0 : index
    %17 = vector.load %arg6[%c0_11, %c0_12] : memref<32x32xbf16, #tpu.memory_space<vmem>>, vector<32x32xbf16>
    tpu.vector_store %arg6[%c0_11, %c0_12], %16 {strides = array<i32>} : memref<32x32xbf16, #tpu.memory_space<vmem>>, vector<32x32xbf16>,
    return
  }
  func.func @transform_0(%arg0: i32) -> (i32, i32) {
    %c0_i32 = arith.constant 0 : i32
    %c0_i32_0 = arith.constant 0 : i32
    return %arg0, %c0_i32 : i32, i32
  }
  func.func @transform_1(%arg0: i32) -> (i32, i32) {
    %c0_i32 = arith.constant 0 : i32
    %c0_i32_0 = arith.constant 0 : i32
    %c0_i32_1 = arith.constant 0 : i32
    return %c0_i32, %c0_i32_0 : i32, i32
  }
  func.func @transform_2(%arg0: i32) -> (i32, i32) {
    %c0_i32 = arith.constant 0 : i32
    %c0_i32_0 = arith.constant 0 : i32
    %c0_i32_1 = arith.constant 0 : i32
    return %c0_i32, %c0_i32_0 : i32, i32
  }
  func.func @transform_3(%arg0: i32) -> (i32, i32) {
    %c0_i32 = arith.constant 0 : i32
    %c0_i32_0 = arith.constant 0 : i32
    %c0_i32_1 = arith.constant 0 : i32
    return %c0_i32, %c0_i32_0 : i32, i32
  }
  func.func @transform_4(%arg0: i32) -> (i32, i32) {
    %c0_i32 = arith.constant 0 : i32
    %c0_i32_0 = arith.constant 0 : i32
    return %arg0, %c0_i32 : i32, i32
  }
  func.func @transform_5(%arg0: i32) -> (i32, i32) {
    %c0_i32 = arith.constant 0 : i32
    %c0_i32_0 = arith.constant 0 : i32
    return %arg0, %c0_i32 : i32, i32
  }
}

module attributes {stable_mosaic.version = 11 : i64} {
  func.func @_dual_proj_kernel(%arg0: i32, %arg1: memref<32x16xf32, #tpu.memory_space<vmem>>, %arg2: memref<32x16xbf16, #tpu.memory_space<vmem>>, %arg3: memref<32x16xbf16, #tpu.memory_space<vmem>>, %arg4: memref<32x32xbf16, #tpu.memory_space<vmem>>, %arg5: memref<32x32xbf16, #tpu.memory_space<vmem>>) attributes {dimension_semantics = [#tpu.dimension_semantics<parallel>], iteration_bounds = array<i64: 1>, scalar_prefetch = 0 : i64, scratch_operands = 0 : i64, tpu.core_type = #tpu.core_type<tc>, window_params = [{transform_indices = @transform_0, window_bounds = array<i64: 32, 16>}, {pipeline_mode = #tpu.pipeline_mode<synchronous>, transform_indices = @transform_1, window_bounds = array<i64: 32, 16>}, {pipeline_mode = #tpu.pipeline_mode<synchronous>, transform_indices = @transform_2, window_bounds = array<i64: 32, 16>}, {transform_indices = @transform_3, window_bounds = array<i64: 32, 32>}, {transform_indices = @transform_4, window_bounds = array<i64: 32, 32>}]} {
    %c0 = arith.constant 0 : index
    %c0_0 = arith.constant 0 : index
    %0 = vector.load %arg1[%c0, %c0_0] : memref<32x16xf32, #tpu.memory_space<vmem>>, vector<32x16xf32>
    %1 = arith.truncf %0 : vector<32x16xf32> to vector<32x16xbf16>
    %c0_1 = arith.constant 0 : index
    %c0_2 = arith.constant 0 : index
    %2 = vector.load %arg2[%c0_1, %c0_2] : memref<32x16xbf16, #tpu.memory_space<vmem>>, vector<32x16xbf16>
    %cst = arith.constant dense<0.000000e+00> : vector<32x32xf32>
    %3 = tpu.matmul %1, %2, %cst {dimension_numbers = #tpu.dot_dimension_numbers<[1], [1], [0], [0], [0, 0, 1, 0], [], []>} : vector<32x16xbf16>, vector<32x16xbf16>, vector<32x32xf32> -> vector<32x32xf32>
    %c0_3 = arith.constant 0 : index
    %c0_4 = arith.constant 0 : index
    %4 = vector.load %arg3[%c0_3, %c0_4] : memref<32x16xbf16, #tpu.memory_space<vmem>>, vector<32x16xbf16>
    %cst_5 = arith.constant dense<0.000000e+00> : vector<32x32xf32>
    %5 = tpu.matmul %1, %4, %cst_5 {dimension_numbers = #tpu.dot_dimension_numbers<[1], [1], [0], [0], [0, 0, 1, 0], [], []>} : vector<32x16xbf16>, vector<32x16xbf16>, vector<32x32xf32> -> vector<32x32xf32>
    %6 = arith.truncf %3 : vector<32x32xf32> to vector<32x32xbf16>
    %c0_6 = arith.constant 0 : index
    %c0_7 = arith.constant 0 : index
    %7 = vector.load %arg4[%c0_6, %c0_7] : memref<32x32xbf16, #tpu.memory_space<vmem>>, vector<32x32xbf16>
    tpu.vector_store %arg4[%c0_6, %c0_7], %6 {strides = array<i32>} : memref<32x32xbf16, #tpu.memory_space<vmem>>, vector<32x32xbf16>,
    %8 = arith.truncf %5 : vector<32x32xf32> to vector<32x32xbf16>
    %c0_8 = arith.constant 0 : index
    %c0_9 = arith.constant 0 : index
    %9 = vector.load %arg5[%c0_8, %c0_9] : memref<32x32xbf16, #tpu.memory_space<vmem>>, vector<32x32xbf16>
    tpu.vector_store %arg5[%c0_8, %c0_9], %8 {strides = array<i32>} : memref<32x32xbf16, #tpu.memory_space<vmem>>, vector<32x32xbf16>,
    return
  }
  func.func @transform_0(%arg0: i32) -> (i32, i32) {
    %c0_i32 = arith.constant 0 : i32
    %c0_i32_0 = arith.constant 0 : i32
    return %arg0, %c0_i32 : i32, i32
  }
  func.func @transform_1(%arg0: i32) -> (i32, i32) {
    %c0_i32 = arith.constant 0 : i32
    %c0_i32_0 = arith.constant 0 : i32
    %c0_i32_1 = arith.constant 0 : i32
    return %c0_i32, %c0_i32_0 : i32, i32
  }
  func.func @transform_2(%arg0: i32) -> (i32, i32) {
    %c0_i32 = arith.constant 0 : i32
    %c0_i32_0 = arith.constant 0 : i32
    %c0_i32_1 = arith.constant 0 : i32
    return %c0_i32, %c0_i32_0 : i32, i32
  }
  func.func @transform_3(%arg0: i32) -> (i32, i32) {
    %c0_i32 = arith.constant 0 : i32
    %c0_i32_0 = arith.constant 0 : i32
    return %arg0, %c0_i32 : i32, i32
  }
  func.func @transform_4(%arg0: i32) -> (i32, i32) {
    %c0_i32 = arith.constant 0 : i32
    %c0_i32_0 = arith.constant 0 : i32
    return %arg0, %c0_i32 : i32, i32
  }
}

module attributes {stable_mosaic.version = 11 : i64} {
  func.func @_attn_gate_out_kernel(%arg0: i32, %arg1: i32, %arg2: i32, %arg3: memref<1x1x16x8xbf16, #tpu.memory_space<vmem>>, %arg4: memref<1x1x16x8xbf16, #tpu.memory_space<vmem>>, %arg5: memref<1x1x16x8xbf16, #tpu.memory_space<vmem>>, %arg6: memref<1x1x16x8xbf16, #tpu.memory_space<vmem>>, %arg7: memref<1x16x8xbf16, #tpu.memory_space<vmem>>, %arg8: memref<1x16xf32, #tpu.memory_space<vmem>>, %arg9: memref<1x1x16x16xf32, #tpu.memory_space<vmem>>, %arg10: memref<1x16x16xf32, #tpu.memory_space<vmem>>) attributes {dimension_semantics = [#tpu.dimension_semantics<parallel>, #tpu.dimension_semantics<parallel>, #tpu.dimension_semantics<arbitrary>], iteration_bounds = array<i64: 2, 1, 4>, scalar_prefetch = 0 : i64, scratch_operands = 0 : i64, tpu.core_type = #tpu.core_type<tc>, window_params = [{transform_indices = @transform_0, window_bounds = array<i64: 1, 1, 16, 8>}, {transform_indices = @transform_1, window_bounds = array<i64: 1, 1, 16, 8>}, {transform_indices = @transform_2, window_bounds = array<i64: 1, 1, 16, 8>}, {transform_indices = @transform_3, window_bounds = array<i64: 1, 1, 16, 8>}, {transform_indices = @transform_4, window_bounds = array<i64: 1, 16, 8>}, {pipeline_mode = #tpu.pipeline_mode<synchronous>, transform_indices = @transform_5, window_bounds = array<i64: 1, 16>}, {transform_indices = @transform_6, window_bounds = array<i64: 1, 1, 16, 16>}, {transform_indices = @transform_7, window_bounds = array<i64: 1, 16, 16>}]} {
    %c0 = arith.constant 0 : index
    %c0_0 = arith.constant 0 : index
    %c0_1 = arith.constant 0 : index
    %c0_2 = arith.constant 0 : index
    %0 = vector.load %arg3[%c0, %c0_0, %c0_1, %c0_2] : memref<1x1x16x8xbf16, #tpu.memory_space<vmem>>, vector<1x1x16x8xbf16>
    %1 = vector.shape_cast %0 : vector<1x1x16x8xbf16> to vector<16x8xbf16>
    %c0_3 = arith.constant 0 : index
    %c0_4 = arith.constant 0 : index
    %c0_5 = arith.constant 0 : index
    %c0_6 = arith.constant 0 : index
    %2 = vector.load %arg4[%c0_3, %c0_4, %c0_5, %c0_6] : memref<1x1x16x8xbf16, #tpu.memory_space<vmem>>, vector<1x1x16x8xbf16>
    %3 = vector.shape_cast %2 : vector<1x1x16x8xbf16> to vector<16x8xbf16>
    %c0_7 = arith.constant 0 : index
    %c0_8 = arith.constant 0 : index
    %c0_9 = arith.constant 0 : index
    %c0_10 = arith.constant 0 : index
    %4 = vector.load %arg5[%c0_7, %c0_8, %c0_9, %c0_10] : memref<1x1x16x8xbf16, #tpu.memory_space<vmem>>, vector<1x1x16x8xbf16>
    %5 = vector.shape_cast %4 : vector<1x1x16x8xbf16> to vector<16x8xbf16>
    %cst = arith.constant dense<0.000000e+00> : vector<16x16xf32>
    %6 = tpu.matmul %1, %3, %cst {dimension_numbers = #tpu.dot_dimension_numbers<[1], [1], [0], [0], [0, 0, 1, 0], [], []>} : vector<16x8xbf16>, vector<16x8xbf16>, vector<16x16xf32> -> vector<16x16xf32>
    %c0_11 = arith.constant 0 : index
    %c0_12 = arith.constant 0 : index
    %c0_13 = arith.constant 0 : index
    %c0_14 = arith.constant 0 : index
    %7 = vector.load %arg9[%c0_11, %c0_12, %c0_13, %c0_14] : memref<1x1x16x16xf32, #tpu.memory_space<vmem>>, vector<1x1x16x16xf32>
    %8 = vector.shape_cast %7 : vector<1x1x16x16xf32> to vector<16x16xf32>
    %9 = arith.addf %6, %8 : vector<16x16xf32>
    %cst_15 = arith.constant dense<0xFF800000> : vector<16xf32>
    %10 = vector.multi_reduction <maximumf>, %9, %cst_15 [1] : vector<16x16xf32> to vector<16xf32>
    %11 = vector.shape_cast %10 : vector<16xf32> to vector<16x1xf32>
    %12 = vector.broadcast %11 : vector<16x1xf32> to vector<16x16xf32>
    %13 = arith.subf %9, %12 : vector<16x16xf32>
    %14 = math.exp %13 : vector<16x16xf32>
    %cst_16 = arith.constant dense<0.000000e+00> : vector<16xf32>
    %15 = vector.multi_reduction <add>, %14, %cst_16 [1] : vector<16x16xf32> to vector<16xf32>
    %16 = vector.shape_cast %15 : vector<16xf32> to vector<16x1xf32>
    %17 = arith.truncf %14 : vector<16x16xf32> to vector<16x16xbf16>
    %cst_17 = arith.constant dense<0.000000e+00> : vector<16x8xf32>
    %18 = tpu.matmul %17, %5, %cst_17 {dimension_numbers = #tpu.dot_dimension_numbers<[1], [0], [0], [1], [0, 0, 1, 1], [], []>} : vector<16x16xbf16>, vector<16x8xbf16>, vector<16x8xf32> -> vector<16x8xf32>
    %19 = tpu.reciprocal %16 {approx = true} : vector<16x1xf32> -> vector<16x1xf32>
    %20 = vector.broadcast %19 : vector<16x1xf32> to vector<16x8xf32>
    %21 = arith.mulf %18, %20 : vector<16x8xf32>
    %22 = arith.truncf %21 : vector<16x8xf32> to vector<16x8xbf16>
    %c0_18 = arith.constant 0 : index
    %c0_19 = arith.constant 0 : index
    %c0_20 = arith.constant 0 : index
    %c0_21 = arith.constant 0 : index
    %23 = vector.load %arg6[%c0_18, %c0_19, %c0_20, %c0_21] : memref<1x1x16x8xbf16, #tpu.memory_space<vmem>>, vector<1x1x16x8xbf16>
    %24 = vector.shape_cast %23 : vector<1x1x16x8xbf16> to vector<16x8xbf16>
    %25 = arith.mulf %22, %24 : vector<16x8xbf16>
    %c0_22 = arith.constant 0 : index
    %c0_23 = arith.constant 0 : index
    %c0_24 = arith.constant 0 : index
    %26 = vector.load %arg7[%c0_22, %c0_23, %c0_24] : memref<1x16x8xbf16, #tpu.memory_space<vmem>>, vector<1x16x8xbf16>
    %27 = vector.shape_cast %26 : vector<1x16x8xbf16> to vector<16x8xbf16>
    %cst_25 = arith.constant dense<0.000000e+00> : vector<16x16xf32>
    %28 = tpu.matmul %25, %27, %cst_25 {dimension_numbers = #tpu.dot_dimension_numbers<[1], [1], [0], [0], [0, 0, 1, 0], [], []>} : vector<16x8xbf16>, vector<16x8xbf16>, vector<16x16xf32> -> vector<16x16xf32>
    %c0_i32 = arith.constant 0 : i32
    %29 = arith.cmpi eq, %arg2, %c0_i32 : i32
    %30 = arith.extui %29 : i1 to i32
    %c0_i32_26 = arith.constant 0 : i32
    %31 = arith.cmpi ne, %30, %c0_i32_26 : i32
    scf.if %31 {
      %c0_29 = arith.constant 0 : index
      %c0_30 = arith.constant 0 : index
      %35 = vector.load %arg8[%c0_29, %c0_30] : memref<1x16xf32, #tpu.memory_space<vmem>>, vector<1x16xf32>
      %36 = vector.broadcast %35 : vector<1x16xf32> to vector<16x16xf32>
      %37 = arith.addf %36, %28 : vector<16x16xf32>
      %c0_31 = arith.constant 0 : index
      %c0_32 = arith.constant 0 : index
      %c0_33 = arith.constant 0 : index
      %38 = vector.load %arg10[%c0_31, %c0_32, %c0_33] : memref<1x16x16xf32, #tpu.memory_space<vmem>>, vector<1x16x16xf32>
      %39 = vector.shape_cast %38 : vector<1x16x16xf32> to vector<16x16xf32>
      %40 = vector.shape_cast %37 : vector<16x16xf32> to vector<1x16x16xf32>
      tpu.vector_store %arg10[%c0_31, %c0_32, %c0_33], %40 {strides = array<i32>} : memref<1x16x16xf32, #tpu.memory_space<vmem>>, vector<1x16x16xf32>,
    } else {
    }
    %c0_i32_27 = arith.constant 0 : i32
    %32 = arith.cmpi ne, %arg2, %c0_i32_27 : i32
    %33 = arith.extui %32 : i1 to i32
    %c0_i32_28 = arith.constant 0 : i32
    %34 = arith.cmpi ne, %33, %c0_i32_28 : i32
    scf.if %34 {
      %c0_29 = arith.constant 0 : index
      %c0_30 = arith.constant 0 : index
      %c0_31 = arith.constant 0 : index
      %35 = vector.load %arg10[%c0_29, %c0_30, %c0_31] : memref<1x16x16xf32, #tpu.memory_space<vmem>>, vector<1x16x16xf32>
      %36 = vector.shape_cast %35 : vector<1x16x16xf32> to vector<16x16xf32>
      %37 = arith.addf %36, %28 : vector<16x16xf32>
      %c0_32 = arith.constant 0 : index
      %c0_33 = arith.constant 0 : index
      %c0_34 = arith.constant 0 : index
      %38 = vector.load %arg10[%c0_32, %c0_33, %c0_34] : memref<1x16x16xf32, #tpu.memory_space<vmem>>, vector<1x16x16xf32>
      %39 = vector.shape_cast %38 : vector<1x16x16xf32> to vector<16x16xf32>
      %40 = vector.shape_cast %37 : vector<16x16xf32> to vector<1x16x16xf32>
      tpu.vector_store %arg10[%c0_32, %c0_33, %c0_34], %40 {strides = array<i32>} : memref<1x16x16xf32, #tpu.memory_space<vmem>>, vector<1x16x16xf32>,
    } else {
    }
    return
  }
  func.func @transform_0(%arg0: i32, %arg1: i32, %arg2: i32) -> (i32, i32, i32, i32) {
    %c0_i32 = arith.constant 0 : i32
    %c0_i32_0 = arith.constant 0 : i32
    return %arg0, %arg2, %arg1, %c0_i32 : i32, i32, i32, i32
  }
  func.func @transform_1(%arg0: i32, %arg1: i32, %arg2: i32) -> (i32, i32, i32, i32) {
    %c0_i32 = arith.constant 0 : i32
    %c0_i32_0 = arith.constant 0 : i32
    %c0_i32_1 = arith.constant 0 : i32
    return %arg0, %arg2, %c0_i32, %c0_i32_0 : i32, i32, i32, i32
  }
  func.func @transform_2(%arg0: i32, %arg1: i32, %arg2: i32) -> (i32, i32, i32, i32) {
    %c0_i32 = arith.constant 0 : i32
    %c0_i32_0 = arith.constant 0 : i32
    %c0_i32_1 = arith.constant 0 : i32
    return %arg0, %arg2, %c0_i32, %c0_i32_0 : i32, i32, i32, i32
  }
  func.func @transform_3(%arg0: i32, %arg1: i32, %arg2: i32) -> (i32, i32, i32, i32) {
    %c0_i32 = arith.constant 0 : i32
    %c0_i32_0 = arith.constant 0 : i32
    return %arg0, %arg2, %arg1, %c0_i32 : i32, i32, i32, i32
  }
  func.func @transform_4(%arg0: i32, %arg1: i32, %arg2: i32) -> (i32, i32, i32) {
    %c0_i32 = arith.constant 0 : i32
    %c0_i32_0 = arith.constant 0 : i32
    %c0_i32_1 = arith.constant 0 : i32
    return %arg2, %c0_i32, %c0_i32_0 : i32, i32, i32
  }
  func.func @transform_5(%arg0: i32, %arg1: i32, %arg2: i32) -> (i32, i32) {
    %c0_i32 = arith.constant 0 : i32
    %c0_i32_0 = arith.constant 0 : i32
    %c0_i32_1 = arith.constant 0 : i32
    return %c0_i32, %c0_i32_0 : i32, i32
  }
  func.func @transform_6(%arg0: i32, %arg1: i32, %arg2: i32) -> (i32, i32, i32, i32) {
    %c0_i32 = arith.constant 0 : i32
    %c0_i32_0 = arith.constant 0 : i32
    %c0_i32_1 = arith.constant 0 : i32
    return %arg0, %c0_i32, %arg1, %c0_i32_0 : i32, i32, i32, i32
  }
  func.func @transform_7(%arg0: i32, %arg1: i32, %arg2: i32) -> (i32, i32, i32) {
    %c0_i32 = arith.constant 0 : i32
    %c0_i32_0 = arith.constant 0 : i32
    return %arg0, %arg1, %c0_i32 : i32, i32, i32
  }
}

</mosaic_0001>

<llo_original>
// kernel: _lambda_.3
$region0: #{_lambda_.3}
  #allocation0 [shape = 'u32[]', space=smem, size = 0x4, offset = 0x4, fixed_abs, tag = 'smem constant byte address 0x4 - core index']
  #allocation1 [shape = 'u32[144,128]{1,0:T(1,128)}', space=vmem, size = 0x12000, scoped, tag = 'internal scratch']
  %s0 = inlined_call_operand.hbm [shape: f32[32,16], index: 0, kind: input, shape index: {}]
  %s1 = inlined_call_operand.vmem [shape: bf16[32,16], index: 1, kind: input, shape index: {}]
  %s2 = inlined_call_operand.vmem [shape: bf16[32,16], index: 2, kind: input, shape index: {}]
  %s3 = inlined_call_operand.vmem [shape: f32[1,32], index: 3, kind: input, shape index: {}]
  %s4 = inlined_call_operand.vmem [shape: bf16[32,32], index: 4, kind: output, shape index: {0}]
  %s5 = inlined_call_operand.vmem [shape: bf16[32,32], index: 5, kind: output, shape index: {1}]
  %6 = xla_tuple %s4, %s5
  %s7 = sld [smem:[#allocation0]]
  $region38: #{_lambda_.3} parent=0
    _
  %s9 = ssub.s32 1, %s7
  %s10 = scalar_select 0, %s9, %s7
  $region1: #{_lambda_.3} parent=0
    #allocation2 [shape = 'u8[16384]{0}', space=vmem, size = 0x4000, scoped, tag = 'input window, operand 0, single buffered']
    #allocation3 [shape = 's32[1]{0}', space=sflag, size = 0x4, scoped, tag = 'scoped memory for _lambda_.3']
    %11 = vsyncpa [#allocation3], 0
    // Predicated region
    $region2: #{_lambda_.3} parent=1 // pred_check
      _
    $region3: #{_lambda_.3} parent=1 // pred_check_branch
      %13 = sbr.rel (0) target = $region5
    $region4: #{_lambda_.3} parent=1 // pred_region
      %s15 = ssub.s32 512, 512
      %16 = vsyncadd [#allocation3], %s15
      %s17 = sshll.u32 [#allocation2], 4
      %s18 = int_to_ptr.vmem [resolvable:$true] %s17
      %23 = dma.hbm_to_vmem [thread:$0]  %s0, 512, %s18, [#allocation3], 128, 128, 8
    $region5: #{_lambda_.3} parent=1 // pred_fallthru
      _
    // Predicated region
    $region6: #{_lambda_.3} parent=1 // pred_check
      _
    $region7: #{_lambda_.3} parent=1 // pred_check_branch
      %25 = sbr.rel (0) target = $region9
    $region8: #{_lambda_.3} parent=1 // pred_region
      _
    $region9: #{_lambda_.3} parent=1 // pred_fallthru
      _
    // Predicated region
    $region10: #{_lambda_.3} parent=1 // pred_check
      _
    $region11: #{_lambda_.3} parent=1 // pred_check_branch
      %27 = sbr.rel (0) target = $region13
    $region12: #{_lambda_.3} parent=1 // pred_region
      _
    $region13: #{_lambda_.3} parent=1 // pred_fallthru
      _
    // Predicated region
    $region14: #{_lambda_.3} parent=1 // pred_check
      _
    $region15: #{_lambda_.3} parent=1 // pred_check_branch
      %29 = sbr.rel (0) target = $region17
    $region16: #{_lambda_.3} parent=1 // pred_region
      _
    $region17: #{_lambda_.3} parent=1 // pred_fallthru
      _
    // Predicated region
    $region18: #{_lambda_.3} parent=1 // pred_check
      _
    $region19: #{_lambda_.3} parent=1 // pred_check_branch
      %31 = sbr.rel (0) target = $region21
    $region20: #{_lambda_.3} parent=1 // pred_region
      %32 = dma.done [#allocation3], 512
    $region21: #{_lambda_.3} parent=1 // pred_fallthru
      _
    %v34 = vld [vmem:[#allocation2] sm:$0xff]
    %v35 = vld [vmem:[#allocation2 + $0x8] sm:$0xff]
    %v36 = vld [vmem:[#allocation2 + $0x10] sm:$0xff]
    %v37 = vld [vmem:[#allocation2 + $0x18] sm:$0xff]
    %v38 = vpack.c.bf16 %v35, %v34
    %v39 = vpack.c.bf16 %v37, %v36
    %v40 = vld [vmem:[%s1] sm:$0xf]
    %v41 = vld [vmem:[%s1 + $0x4] sm:$0xf]
    %v42 = vld [vmem:[%s1 + $0x8] sm:$0xf]
    %v43 = vld [vmem:[%s1 + $0xc] sm:$0xf]
    %v48 = vunpack.c.l.b16 %v40
    %v49 = vunpack.c.l.b16 %v41
    %v50 = vunpack.c.l.b16 %v42
    %v51 = vunpack.c.l.b16 %v43
    %v52 = vpack.c.b16 %v49, %v48
    %v53 = vpack.c.b16 %v51, %v50
    %vm54 = vcmask 130048
    %v56 = vsel %vm54, %v38, 0
    %v59 = vsel %vm54, %v39, 0
    %v62 = vsel %vm54, %v52, 0
    %v65 = vsel %vm54, %v53, 0
    %67 = vmatprep.subr.bf16.mxu0 0
    %68 = vmatpush1.bf16.xpose.msra.mxu0 %v62
    %69 = vmatprep.subr.bf16.mxu0 0
    %70 = vmatpush1.bf16.xpose.msra.mxu0 %v65
    %71 = vmatprep.subr.bf16.mxu0 0
    %72 = vmatpush1.bf16.xpose.msra.mxu0 0
    %73 = vmatprep.subr.bf16.mxu0 0
    %74 = vmatpush1.bf16.xpose.msra.mxu0 0
    %75 = vmatprep.subr.bf16.mxu0 0
    %76 = vmatpush1.bf16.xpose.msra.mxu0 0
    %77 = vmatprep.subr.bf16.mxu0 0
    %78 = vmatpush1.bf16.xpose.msra.mxu0 0
    %79 = vmatprep.subr.bf16.mxu0 0
    %80 = vmatpush1.bf16.xpose.msra.mxu0 0
    %81 = vmatprep.subr.bf16.mxu0 0
    %82 = vmatpush1.bf16.xpose.msra.mxu0 0
    %83 = vmatprep.subr.bf16.mxu0 0
    %84 = vmatpush1.bf16.xpose.msra.mxu0 0
    %85 = vmatprep.subr.bf16.mxu0 0
    %86 = vmatpush1.bf16.xpose.msra.mxu0 0
    %87 = vmatprep.subr.bf16.mxu0 0
    %88 = vmatpush1.bf16.xpose.msra.mxu0 0
    %89 = vmatprep.subr.bf16.mxu0 0
    %90 = vmatpush1.bf16.xpose.msra.mxu0 0
    %91 = vmatprep.subr.bf16.mxu0 0
    %92 = vmatpush1.bf16.xpose.msra.mxu0 0
    %93 = vmatprep.subr.bf16.mxu0 0
    %94 = vmatpush1.bf16.xpose.msra.mxu0 0
    %95 = vmatprep.subr.bf16.mxu0 0
    %96 = vmatpush1.bf16.xpose.msra.mxu0 0
    %97 = vmatprep.subr.bf16.mxu0 0
    %98 = vmatpush1.bf16.xpose.msra.mxu0 0
    %99 = vmatprep.mubr.bf16.mxu0 0
    %100 = vmatmul.mubr.bf16.gmra.mrb[0].mxu0 %v56
    %v101 = vpop.f32.mrb[0].mxu0
    %v102 = vadd.f32 0.0, %v101
    %v103 = vpop.f32.mrb[0].mxu0
    %v104 = vpop.f32.mrb[0].mxu0
    %v105 = vadd.f32 0.0, %v104
    %v106 = vpop.f32.mrb[0].mxu0
    %107 = vmatprep.mubr.bf16.mxu0 0
    %108 = vmatmul.mubr.bf16.gmra.mrb[0].mxu0 %v59
    %v109 = vpop.f32.mrb[0].mxu0
    %v110 = vadd.f32 0.0, %v109
    %v111 = vpop.f32.mrb[0].mxu0
    %v112 = vpop.f32.mrb[0].mxu0
    %v113 = vadd.f32 0.0, %v112
    %v114 = vpop.f32.mrb[0].mxu0
    %115 = vdwg.mxu0
    %v116 = vld [vmem:[%s2] sm:$0xf]
    %v117 = vld [vmem:[%s2 + $0x4] sm:$0xf]
    %v118 = vld [vmem:[%s2 + $0x8] sm:$0xf]
    %v119 = vld [vmem:[%s2 + $0xc] sm:$0xf]
    %v120 = vld [vmem:[%s3] sm:$0x1]
    %v122 = vlaneseq
    %v123 = vshrl.u32 %v122, 7
    %v124 = vsub.s32 0, %v123
    %v125 = vrot.slane %v120, %v124
    %v131 = vunpack.c.l.b16 %v116
    %v132 = vunpack.c.l.b16 %v117
    %v133 = vunpack.c.l.b16 %v118
    %v134 = vunpack.c.l.b16 %v119
    %v135 = vpack.c.b16 %v132, %v131
    %v136 = vpack.c.b16 %v134, %v133
    %v138 = vsel %vm54, %v135, 0
    %v141 = vsel %vm54, %v136, 0
    %143 = vmatprep.subr.bf16.mxu0 0
    %144 = vmatpush1.bf16.xpose.msra.mxu0 %v138
    %145 = vmatprep.subr.bf16.mxu0 0
    %146 = vmatpush1.bf16.xpose.msra.mxu0 %v141
    %147 = vmatprep.subr.bf16.mxu0 0
    %148 = vmatpush1.bf16.xpose.msra.mxu0 0
    %149 = vmatprep.subr.bf16.mxu0 0
    %150 = vmatpush1.bf16.xpose.msra.mxu0 0
    %151 = vmatprep.subr.bf16.mxu0 0
    %152 = vmatpush1.bf16.xpose.msra.mxu0 0
    %153 = vmatprep.subr.bf16.mxu0 0
    %154 = vmatpush1.bf16.xpose.msra.mxu0 0
    %155 = vmatprep.subr.bf16.mxu0 0
    %156 = vmatpush1.bf16.xpose.msra.mxu0 0
    %157 = vmatprep.subr.bf16.mxu0 0
    %158 = vmatpush1.bf16.xpose.msra.mxu0 0
    %159 = vmatprep.subr.bf16.mxu0 0
    %160 = vmatpush1.bf16.xpose.msra.mxu0 0
    %161 = vmatprep.subr.bf16.mxu0 0
    %162 = vmatpush1.bf16.xpose.msra.mxu0 0
    %163 = vmatprep.subr.bf16.mxu0 0
    %164 = vmatpush1.bf16.xpose.msra.mxu0 0
    %165 = vmatprep.subr.bf16.mxu0 0
    %166 = vmatpush1.bf16.xpose.msra.mxu0 0
    %167 = vmatprep.subr.bf16.mxu0 0
    %168 = vmatpush1.bf16.xpose.msra.mxu0 0
    %169 = vmatprep.subr.bf16.mxu0 0
    %170 = vmatpush1.bf16.xpose.msra.mxu0 0
    %171 = vmatprep.subr.bf16.mxu0 0
    %172 = vmatpush1.bf16.xpose.msra.mxu0 0
    %173 = vmatprep.subr.bf16.mxu0 0
    %174 = vmatpush1.bf16.xpose.msra.mxu0 0
    %175 = vmatprep.mubr.bf16.mxu0 0
    %176 = vmatmul.mubr.bf16.gmra.mrb[0].mxu0 %v56
    %v177 = vpop.f32.mrb[0].mxu0
    %v178 = vadd.f32 %v125, %v177
    %v179 = vpop.f32.mrb[0].mxu0
    %v180 = vpop.f32.mrb[0].mxu0
    %v181 = vadd.f32 %v125, %v180
    %v182 = vpop.f32.mrb[0].mxu0
    %183 = vmatprep.mubr.bf16.mxu0 0
    %184 = vmatmul.mubr.bf16.gmra.mrb[0].mxu0 %v59
    %v185 = vpop.f32.mrb[0].mxu0
    %v186 = vadd.f32 %v125, %v185
    %v187 = vpop.f32.mrb[0].mxu0
    %v188 = vpop.f32.mrb[0].mxu0
    %v189 = vadd.f32 %v125, %v188
    %v190 = vpop.f32.mrb[0].mxu0
    %191 = vdwg.mxu0
    %v192 = vxor.u32 %v178, 2147483648
    %v193 = vxor.u32 %v181, 2147483648
    %v194 = vxor.u32 %v186, 2147483648
    %v195 = vxor.u32 %v189, 2147483648
    %v196 = vmul.f32 %v192, 1.442695
    %v197 = vpow.pop %v196
    %v198 = vmul.f32 %v193, 1.442695
    %v199 = vpow.pop %v198
    %v200 = vmul.f32 %v194, 1.442695
    %v201 = vpow.pop %v200
    %v202 = vmul.f32 %v195, 1.442695
    %v203 = vpow.pop %v202
    %v204 = vadd.f32 %v197, 1.0
    %v205 = vadd.f32 %v199, 1.0
    %v206 = vadd.f32 %v201, 1.0
    %v207 = vadd.f32 %v203, 1.0
    %v208 = vrcp.pop %v204
    %v209 = vmul.f32 1.0, %v208
    %v210 = vrcp.pop %v205
    %v211 = vmul.f32 1.0, %v210
    %v212 = vrcp.pop %v206
    %v213 = vmul.f32 1.0, %v212
    %v214 = vrcp.pop %v207
    %v215 = vmul.f32 1.0, %v214
    %v216 = vpack.c.bf16 %v105, %v102
    %v217 = vpack.c.bf16 %v113, %v110
    %v220 = vunpack.c.l.b16 %v216
    %v221 = vunpack.c.h.b16 %v216
    %v222 = vunpack.c.l.b16 %v217
    %v223 = vunpack.c.h.b16 %v217
    %v224 = vpack.c.b16 %v220, %v220
    %v225 = vpack.c.b16 %v221, %v221
    %v226 = vpack.c.b16 %v222, %v222
    %v227 = vpack.c.b16 %v223, %v223
    %vm232 = vcmask 257024
    %233 = vst.msk [vmem:[%s4] sm:$0xf] %vm232, %v224
    %234 = vst.msk [vmem:[%s4 + $0x4] sm:$0xf] %vm232, %v225
    %235 = vst.msk [vmem:[%s4 + $0x8] sm:$0xf] %vm232, %v226
    %236 = vst.msk [vmem:[%s4 + $0xc] sm:$0xf] %vm232, %v227
    %v237 = vpack.c.bf16 %v211, %v209
    %v238 = vpack.c.bf16 %v215, %v213
    %v241 = vunpack.c.l.b16 %v237
    %v242 = vunpack.c.h.b16 %v237
    %v243 = vunpack.c.l.b16 %v238
    %v244 = vunpack.c.h.b16 %v238
    %v245 = vpack.c.b16 %v241, %v241
    %v246 = vpack.c.b16 %v242, %v242
    %v247 = vpack.c.b16 %v243, %v243
    %v248 = vpack.c.b16 %v244, %v244
    %253 = vst.msk [vmem:[%s5] sm:$0xf] %vm232, %v245
    %254 = vst.msk [vmem:[%s5 + $0x4] sm:$0xf] %vm232, %v246
    %255 = vst.msk [vmem:[%s5 + $0x8] sm:$0xf] %vm232, %v247
    %256 = vst.msk [vmem:[%s5 + $0xc] sm:$0xf] %vm232, %v248
    // Predicated region
    $region22: #{_lambda_.3} parent=1 // pred_check
      _
    $region23: #{_lambda_.3} parent=1 // pred_check_branch
      %258 = sbr.rel (0) target = $region25
    $region24: #{_lambda_.3} parent=1 // pred_region
      _
    $region25: #{_lambda_.3} parent=1 // pred_fallthru
      _
    // Predicated region
    $region26: #{_lambda_.3} parent=1 // pred_check
      _
    $region27: #{_lambda_.3} parent=1 // pred_check_branch
      %260 = sbr.rel (0) target = $region29
    $region28: #{_lambda_.3} parent=1 // pred_region
      _
    $region29: #{_lambda_.3} parent=1 // pred_fallthru
      _
    // Predicated region
    $region30: #{_lambda_.3} parent=1 // pred_check
      _
    $region31: #{_lambda_.3} parent=1 // pred_check_branch
      %262 = sbr.rel (0) target = $region33
    $region32: #{_lambda_.3} parent=1 // pred_region
      _
    $region33: #{_lambda_.3} parent=1 // pred_fallthru
      _
    // Predicated region
    $region34: #{_lambda_.3} parent=1 // pred_check
      _
    $region35: #{_lambda_.3} parent=1 // pred_check_branch
      %264 = sbr.rel (0) target = $region37
    $region36: #{_lambda_.3} parent=1 // pred_region
      _
    $region37: #{_lambda_.3} parent=1 // pred_fallthru
      _
    %265 = vsyncpa [#allocation3], 1

// kernel: _lambda_.4
$region0: #{_lambda_.4}
  #allocation0 [shape = 'u32[]', space=smem, size = 0x4, offset = 0x4, fixed_abs, tag = 'smem constant byte address 0x4 - core index']
  #allocation1 [shape = 'u32[144,128]{1,0:T(1,128)}', space=vmem, size = 0x12000, scoped, tag = 'internal scratch']
  %s0 = inlined_call_operand.vmem [shape: f32[32,16], index: 0, kind: input, shape index: {}]
  %s1 = inlined_call_operand.vmem [shape: bf16[32,16], index: 1, kind: input, shape index: {}]
  %s2 = inlined_call_operand.vmem [shape: bf16[32,16], index: 2, kind: input, shape index: {}]
  %s3 = inlined_call_operand.vmem [shape: bf16[32,32], index: 3, kind: output, shape index: {0}]
  %s4 = inlined_call_operand.vmem [shape: bf16[32,32], index: 4, kind: output, shape index: {1}]
  %5 = xla_tuple %s3, %s4
  %s6 = sld [smem:[#allocation0]]
  $region30: #{_lambda_.4} parent=0
    _
  %s8 = ssub.s32 1, %s6
  %s9 = scalar_select 0, %s8, %s6
  // Predicated region
  $region2: #{_lambda_.4} parent=0 // pred_check
    _
  $region3: #{_lambda_.4} parent=0 // pred_check_branch
    %11 = sbr.rel (0) target = $region5
  $region4: #{_lambda_.4} parent=0 // pred_region
    _
  $region5: #{_lambda_.4} parent=0 // pred_fallthru
    _
  // Predicated region
  $region6: #{_lambda_.4} parent=0 // pred_check
    _
  $region7: #{_lambda_.4} parent=0 // pred_check_branch
    %13 = sbr.rel (0) target = $region9
  $region8: #{_lambda_.4} parent=0 // pred_region
    _
  $region9: #{_lambda_.4} parent=0 // pred_fallthru
    _
  // Predicated region
  $region10: #{_lambda_.4} parent=0 // pred_check
    _
  $region11: #{_lambda_.4} parent=0 // pred_check_branch
    %15 = sbr.rel (0) target = $region13
  $region12: #{_lambda_.4} parent=0 // pred_region
    _
  $region13: #{_lambda_.4} parent=0 // pred_fallthru
    _
  %v17 = vld [vmem:[%s0] sm:$0xff]
  %v18 = vld [vmem:[%s0 + $0x8] sm:$0xff]
  %v19 = vld [vmem:[%s0 + $0x10] sm:$0xff]
  %v20 = vld [vmem:[%s0 + $0x18] sm:$0xff]
  %v21 = vpack.c.bf16 %v18, %v17
  %v22 = vpack.c.bf16 %v20, %v19
  %v23 = vld [vmem:[%s1] sm:$0xf]
  %v24 = vld [vmem:[%s1 + $0x4] sm:$0xf]
  %v25 = vld [vmem:[%s1 + $0x8] sm:$0xf]
  %v26 = vld [vmem:[%s1 + $0xc] sm:$0xf]
  %v31 = vunpack.c.l.b16 %v23
  %v32 = vunpack.c.l.b16 %v24
  %v33 = vunpack.c.l.b16 %v25
  %v34 = vunpack.c.l.b16 %v26
  %v35 = vpack.c.b16 %v32, %v31
  %v36 = vpack.c.b16 %v34, %v33
  %vm37 = vcmask 130048
  %v39 = vsel %vm37, %v21, 0
  %v42 = vsel %vm37, %v22, 0
  %v45 = vsel %vm37, %v35, 0
  %v48 = vsel %vm37, %v36, 0
  %50 = vmatprep.subr.bf16.mxu0 0
  %51 = vmatpush1.bf16.xpose.msra.mxu0 %v45
  %52 = vmatprep.subr.bf16.mxu0 0
  %53 = vmatpush1.bf16.xpose.msra.mxu0 %v48
  %54 = vmatprep.subr.bf16.mxu0 0
  %55 = vmatpush1.bf16.xpose.msra.mxu0 0
  %56 = vmatprep.subr.bf16.mxu0 0
  %57 = vmatpush1.bf16.xpose.msra.mxu0 0
  %58 = vmatprep.subr.bf16.mxu0 0
  %59 = vmatpush1.bf16.xpose.msra.mxu0 0
  %60 = vmatprep.subr.bf16.mxu0 0
  %61 = vmatpush1.bf16.xpose.msra.mxu0 0
  %62 = vmatprep.subr.bf16.mxu0 0
  %63 = vmatpush1.bf16.xpose.msra.mxu0 0
  %64 = vmatprep.subr.bf16.mxu0 0
  %65 = vmatpush1.bf16.xpose.msra.mxu0 0
  %66 = vmatprep.subr.bf16.mxu0 0
  %67 = vmatpush1.bf16.xpose.msra.mxu0 0
  %68 = vmatprep.subr.bf16.mxu0 0
  %69 = vmatpush1.bf16.xpose.msra.mxu0 0
  %70 = vmatprep.subr.bf16.mxu0 0
  %71 = vmatpush1.bf16.xpose.msra.mxu0 0
  %72 = vmatprep.subr.bf16.mxu0 0
  %73 = vmatpush1.bf16.xpose.msra.mxu0 0
  %74 = vmatprep.subr.bf16.mxu0 0
  %75 = vmatpush1.bf16.xpose.msra.mxu0 0
  %76 = vmatprep.subr.bf16.mxu0 0
  %77 = vmatpush1.bf16.xpose.msra.mxu0 0
  %78 = vmatprep.subr.bf16.mxu0 0
  %79 = vmatpush1.bf16.xpose.msra.mxu0 0
  %80 = vmatprep.subr.bf16.mxu0 0
  %81 = vmatpush1.bf16.xpose.msra.mxu0 0
  %82 = vmatprep.mubr.bf16.mxu0 0
  %83 = vmatmul.mubr.bf16.gmra.mrb[0].mxu0 %v39
  %v84 = vpop.f32.mrb[0].mxu0
  %v85 = vadd.f32 0.0, %v84
  %v86 = vpop.f32.mrb[0].mxu0
  %v87 = vpop.f32.mrb[0].mxu0
  %v88 = vadd.f32 0.0, %v87
  %v89 = vpop.f32.mrb[0].mxu0
  %90 = vmatprep.mubr.bf16.mxu0 0
  %91 = vmatmul.mubr.bf16.gmra.mrb[0].mxu0 %v42
  %v92 = vpop.f32.mrb[0].mxu0
  %v93 = vadd.f32 0.0, %v92
  %v94 = vpop.f32.mrb[0].mxu0
  %v95 = vpop.f32.mrb[0].mxu0
  %v96 = vadd.f32 0.0, %v95
  %v97 = vpop.f32.mrb[0].mxu0
  %98 = vdwg.mxu0
  %v99 = vld [vmem:[%s2] sm:$0xf]
  %v100 = vld [vmem:[%s2 + $0x4] sm:$0xf]
  %v101 = vld [vmem:[%s2 + $0x8] sm:$0xf]
  %v102 = vld [vmem:[%s2 + $0xc] sm:$0xf]
  %v107 = vunpack.c.l.b16 %v99
  %v108 = vunpack.c.l.b16 %v100
  %v109 = vunpack.c.l.b16 %v101
  %v110 = vunpack.c.l.b16 %v102
  %v111 = vpack.c.b16 %v108, %v107
  %v112 = vpack.c.b16 %v110, %v109
  %v114 = vsel %vm37, %v111, 0
  %v117 = vsel %vm37, %v112, 0
  %119 = vmatprep.subr.bf16.mxu0 0
  %120 = vmatpush1.bf16.xpose.msra.mxu0 %v114
  %121 = vmatprep.subr.bf16.mxu0 0
  %122 = vmatpush1.bf16.xpose.msra.mxu0 %v117
  %123 = vmatprep.subr.bf16.mxu0 0
  %124 = vmatpush1.bf16.xpose.msra.mxu0 0
  %125 = vmatprep.subr.bf16.mxu0 0
  %126 = vmatpush1.bf16.xpose.msra.mxu0 0
  %127 = vmatprep.subr.bf16.mxu0 0
  %128 = vmatpush1.bf16.xpose.msra.mxu0 0
  %129 = vmatprep.subr.bf16.mxu0 0
  %130 = vmatpush1.bf16.xpose.msra.mxu0 0
  %131 = vmatprep.subr.bf16.mxu0 0
  %132 = vmatpush1.bf16.xpose.msra.mxu0 0
  %133 = vmatprep.subr.bf16.mxu0 0
  %134 = vmatpush1.bf16.xpose.msra.mxu0 0
  %135 = vmatprep.subr.bf16.mxu0 0
  %136 = vmatpush1.bf16.xpose.msra.mxu0 0
  %137 = vmatprep.subr.bf16.mxu0 0
  %138 = vmatpush1.bf16.xpose.msra.mxu0 0
  %139 = vmatprep.subr.bf16.mxu0 0
  %140 = vmatpush1.bf16.xpose.msra.mxu0 0
  %141 = vmatprep.subr.bf16.mxu0 0
  %142 = vmatpush1.bf16.xpose.msra.mxu0 0
  %143 = vmatprep.subr.bf16.mxu0 0
  %144 = vmatpush1.bf16.xpose.msra.mxu0 0
  %145 = vmatprep.subr.bf16.mxu0 0
  %146 = vmatpush1.bf16.xpose.msra.mxu0 0
  %147 = vmatprep.subr.bf16.mxu0 0
  %148 = vmatpush1.bf16.xpose.msra.mxu0 0
  %149 = vmatprep.subr.bf16.mxu0 0
  %150 = vmatpush1.bf16.xpose.msra.mxu0 0
  %151 = vmatprep.mubr.bf16.mxu0 0
  %152 = vmatmul.mubr.bf16.gmra.mrb[0].mxu0 %v39
  %v153 = vpop.f32.mrb[0].mxu0
  %v154 = vadd.f32 0.0, %v153
  %v155 = vpop.f32.mrb[0].mxu0
  %v156 = vpop.f32.mrb[0].mxu0
  %v157 = vadd.f32 0.0, %v156
  %v158 = vpop.f32.mrb[0].mxu0
  %159 = vmatprep.mubr.bf16.mxu0 0
  %160 = vmatmul.mubr.bf16.gmra.mrb[0].mxu0 %v42
  %v161 = vpop.f32.mrb[0].mxu0
  %v162 = vadd.f32 0.0, %v161
  %v163 = vpop.f32.mrb[0].mxu0
  %v164 = vpop.f32.mrb[0].mxu0
  %v165 = vadd.f32 0.0, %v164
  %v166 = vpop.f32.mrb[0].mxu0
  %167 = vdwg.mxu0
  %v168 = vpack.c.bf16 %v88, %v85
  %v169 = vpack.c.bf16 %v96, %v93
  %v172 = vunpack.c.l.b16 %v168
  %v173 = vunpack.c.h.b16 %v168
  %v174 = vunpack.c.l.b16 %v169
  %v175 = vunpack.c.h.b16 %v169
  %v176 = vpack.c.b16 %v172, %v172
  %v177 = vpack.c.b16 %v173, %v173
  %v178 = vpack.c.b16 %v174, %v174
  %v179 = vpack.c.b16 %v175, %v175
  %vm184 = vcmask 257024
  %185 = vst.msk [vmem:[%s3] sm:$0xf] %vm184, %v176
  %186 = vst.msk [vmem:[%s3 + $0x4] sm:$0xf] %vm184, %v177
  %187 = vst.msk [vmem:[%s3 + $0x8] sm:$0xf] %vm184, %v178
  %188 = vst.msk [vmem:[%s3 + $0xc] sm:$0xf] %vm184, %v179
  %v189 = vpack.c.bf16 %v157, %v154
  %v190 = vpack.c.bf16 %v165, %v162
  %v193 = vunpack.c.l.b16 %v189
  %v194 = vunpack.c.h.b16 %v189
  %v195 = vunpack.c.l.b16 %v190
  %v196 = vunpack.c.h.b16 %v190
  %v197 = vpack.c.b16 %v193, %v193
  %v198 = vpack.c.b16 %v194, %v194
  %v199 = vpack.c.b16 %v195, %v195
  %v200 = vpack.c.b16 %v196, %v196
  %205 = vst.msk [vmem:[%s4] sm:$0xf] %vm184, %v197
  %206 = vst.msk [vmem:[%s4 + $0x4] sm:$0xf] %vm184, %v198
  %207 = vst.msk [vmem:[%s4 + $0x8] sm:$0xf] %vm184, %v199
  %208 = vst.msk [vmem:[%s4 + $0xc] sm:$0xf] %vm184, %v200
  // Predicated region
  $region14: #{_lambda_.4} parent=0 // pred_check
    _
  $region15: #{_lambda_.4} parent=0 // pred_check_branch
    %210 = sbr.rel (0) target = $region17
  $region16: #{_lambda_.4} parent=0 // pred_region
    _
  $region17: #{_lambda_.4} parent=0 // pred_fallthru
    _
  // Predicated region
  $region18: #{_lambda_.4} parent=0 // pred_check
    _
  $region19: #{_lambda_.4} parent=0 // pred_check_branch
    %212 = sbr.rel (0) target = $region21
  $region20: #{_lambda_.4} parent=0 // pred_region
    _
  $region21: #{_lambda_.4} parent=0 // pred_fallthru
    _
  // Predicated region
  $region22: #{_lambda_.4} parent=0 // pred_check
    _
  $region23: #{_lambda_.4} parent=0 // pred_check_branch
    %214 = sbr.rel (0) target = $region25
  $region24: #{_lambda_.4} parent=0 // pred_region
    _
  $region25: #{_lambda_.4} parent=0 // pred_fallthru
    _
  // Predicated region
  $region26: #{_lambda_.4} parent=0 // pred_check
    _
  $region27: #{_lambda_.4} parent=0 // pred_check_branch
    %216 = sbr.rel (0) target = $region29
  $region28: #{_lambda_.4} parent=0 // pred_region
    _
  $region29: #{_lambda_.4} parent=0 // pred_fallthru
    _

// kernel: _lambda_.5
$region0: #{_lambda_.5}
  #allocation0 [shape = 'u32[]', space=smem, size = 0x4, offset = 0x4, fixed_abs, tag = 'smem constant byte address 0x4 - core index']
  #allocation1 [shape = 'u32[144,128]{1,0:T(1,128)}', space=vmem, size = 0x12000, scoped, tag = 'internal scratch']
  %s0 = inlined_call_operand.vmem [shape: bf16[2,4,16,8], index: 0, kind: input, shape index: {}]
  %s1 = inlined_call_operand.vmem [shape: bf16[2,4,16,8], index: 1, kind: input, shape index: {}]
  %s2 = inlined_call_operand.vmem [shape: bf16[2,4,16,8], index: 2, kind: input, shape index: {}]
  %s3 = inlined_call_operand.vmem [shape: bf16[2,4,16,8], index: 3, kind: input, shape index: {}]
  %s4 = inlined_call_operand.vmem [shape: bf16[4,16,8], index: 4, kind: input, shape index: {}]
  %s5 = inlined_call_operand.vmem [shape: f32[1,16], index: 5, kind: input, shape index: {}]
  %s6 = inlined_call_operand.vmem [shape: f32[2,1,16,16], index: 6, kind: input, shape index: {}]
  %s7 = inlined_call_operand.hbm [shape: f32[2,16,16], index: 7, kind: output, shape index: {}]
  %s8 = sld [smem:[#allocation0]]
  $region69: #{_lambda_.5} parent=0
    _
  %s10 = ssub.s32 1, %s8
  %s11 = scalar_select 0, %s10, %s8
  $region1: #{_lambda_.5} parent=0
    #allocation2 [shape = 'u8[16384]{0}', space=vmem, size = 0x4000, scoped, tag = 'output window, operand 0']
    #allocation3 [shape = 's32[2]{0}', space=sflag, size = 0x8, scoped, tag = 'scoped memory for _lambda_.5']
    %12 = vsyncpa [#allocation3], 0
    %s13 = scalar_lea.sflag [#allocation3], 1
    %14 = vsyncpa %s13, 0
    loop: start=0, step=1, limit=10
    $region2: #{_lambda_.5} parent=1 // loop_pre_header
      _
    $region3: #{_lambda_.5} parent=1 // loop_header
      %s16 = sphi 0, %s20
      %p17 = scmp.ge.s32.totalorder %s16, 10
      %s23 = sphi 0, %s42
      %s24 = sphi 0, %s38
      %s25 = sphi 0, %s34
      %s26 = sphi 0, %s23
      %s27 = sphi 0, %s24
      %s28 = sphi 0, %s25
      %s29 = sphi 0, %s26
      %s30 = sphi 0, %s27
      %s31 = sphi 0, %s28
      %s49 = sphi 0, %s51
      %s52 = sphi 0, %s49
      %s53 = sphi 0, %s52
      %s69 = sphi 0, %s53
      %s77 = sphi 0, %s79
      %s80 = sphi 0, %s77
      %s81 = sphi 0, %s80
      %s97 = sphi 0, %s81
      %s105 = sphi 0, %s107
      %s108 = sphi 0, %s105
      %s109 = sphi 0, %s108
      %s125 = sphi 0, %s109
      %s135 = sphi 0, %s137
      %s138 = sphi 0, %s135
      %s139 = sphi 0, %s138
      %s155 = sphi 0, %s139
      %s161 = sphi 0, %s163
      %s164 = sphi 0, %s161
      %s165 = sphi 0, %s164
      %s181 = sphi 0, %s165
      %s185 = sphi 0, %s185
      %s187 = sphi 0, %s185
      %s188 = sphi 0, %s187
      %s202 = sphi 0, %s188
      %s210 = sphi 0, %s212
      %s213 = sphi 0, %s210
      %s214 = sphi 0, %s213
      %s230 = sphi 0, %s214
      %s238 = sphi 0, %s240
      %s241 = sphi 0, %s238
      %s242 = sphi 0, %s241
      %s258 = sphi 0, %s242
    $region4: #{_lambda_.5} parent=1 // loop_header_branch
      %19 = sbr.rel (%p17) target = $region8
    $region5: #{_lambda_.5} parent=1 // loop_body
      %s21 = ssub.s32 %s16, 1
      %s22 = ssub.s32 %s16, 2
      %s32 = sadd.s32 1, %s25
      %p33 = scmp.ge.s32.totalorder %s32, 4
      %s34 = scalar_select %p33, 0, %s32
      %s35 = sadd.s32 1, %s24
      %s36 = scalar_select %p33, %s35, %s24
      %p37 = scmp.ge.s32.totalorder %s36, 1
      %s38 = scalar_select %p37, 0, %s36
      %s39 = sadd.s32 1, %s23
      %s40 = scalar_select %p37, %s39, %s23
      %p41 = scmp.ge.s32.totalorder %s40, 2
      %s42 = scalar_select %p41, 0, %s40
      %s43 = ssub.s32 %s23, %s42
      %s44 = ssub.s32 %s25, %s34
      %s45 = sor.u32 %s43, %s44
      %s46 = ssub.s32 %s24, %s38
      %s47 = sor.u32 %s45, %s46
      %p48 = scmp.eq.s32.totalorder %s47, 0
      %s50 = sadd.s32 %s49, 1
      %s51 = scalar_select %p48, %s49, %s50
      %p54 = pneg %p48
      %p55 = scmp.eq.s32.totalorder %s16, 7
      %p56 = por %p54, %p55
      %p57 = scmp.ne.s32.totalorder %s49, %s52
      %p58 = scmp.eq.s32.totalorder %s16, 0
      %p59 = por %p57, %p58
      %p60 = scmp.ne.s32.totalorder %s49, %s52
      %p61 = scmp.eq.s32.totalorder %s21, 7
      %p62 = por %p60, %p61
      %p63 = scmp.ne.s32.totalorder %s52, %s53
      %p64 = scmp.eq.s32.totalorder %s21, 0
      %p65 = por %p63, %p64
      %p66 = scmp.ne.s32.totalorder %s52, %s53
      %p67 = scmp.eq.s32.totalorder %s22, 7
      %p68 = por %p66, %p67
      %p70 = scmp.ne.s32.totalorder %s53, %s69
      %p71 = scmp.eq.s32.totalorder %s22, 0
      %p72 = por %p70, %p71
      %s73 = ssub.s32 %s23, %s42
      %s74 = ssub.s32 %s25, %s34
      %s75 = sor.u32 %s73, %s74
      %p76 = scmp.eq.s32.totalorder %s75, 0
      %s78 = sadd.s32 %s77, 1
      %s79 = scalar_select %p76, %s77, %s78
      %p82 = pneg %p76
      %p83 = scmp.eq.s32.totalorder %s16, 7
      %p84 = por %p82, %p83
      %p85 = scmp.ne.s32.totalorder %s77, %s80
      %p86 = scmp.eq.s32.totalorder %s16, 0
      %p87 = por %p85, %p86
      %p88 = scmp.ne.s32.totalorder %s77, %s80
      %p89 = scmp.eq.s32.totalorder %s21, 7
      %p90 = por %p88, %p89
      %p91 = scmp.ne.s32.totalorder %s80, %s81
      %p92 = scmp.eq.s32.totalorder %s21, 0
      %p93 = por %p91, %p92
      %p94 = scmp.ne.s32.totalorder %s80, %s81
      %p95 = scmp.eq.s32.totalorder %s22, 7
      %p96 = por %p94, %p95
      %p98 = scmp.ne.s32.totalorder %s81, %s97
      %p99 = scmp.eq.s32.totalorder %s22, 0
      %p100 = por %p98, %p99
      %s101 = ssub.s32 %s23, %s42
      %s102 = ssub.s32 %s25, %s34
      %s103 = sor.u32 %s101, %s102
      %p104 = scmp.eq.s32.totalorder %s103, 0
      %s106 = sadd.s32 %s105, 1
      %s107 = scalar_select %p104, %s105, %s106
      %p110 = pneg %p104
      %p111 = scmp.eq.s32.totalorder %s16, 7
      %p112 = por %p110, %p111
      %p113 = scmp.ne.s32.totalorder %s105, %s108
      %p114 = scmp.eq.s32.totalorder %s16, 0
      %p115 = por %p113, %p114
      %p116 = scmp.ne.s32.totalorder %s105, %s108
      %p117 = scmp.eq.s32.totalorder %s21, 7
      %p118 = por %p116, %p117
      %p119 = scmp.ne.s32.totalorder %s108, %s109
      %p120 = scmp.eq.s32.totalorder %s21, 0
      %p121 = por %p119, %p120
      %p122 = scmp.ne.s32.totalorder %s108, %s109
      %p123 = scmp.eq.s32.totalorder %s22, 7
      %p124 = por %p122, %p123
      %p126 = scmp.ne.s32.totalorder %s109, %s125
      %p127 = scmp.eq.s32.totalorder %s22, 0
      %p128 = por %p126, %p127
      %s129 = ssub.s32 %s23, %s42
      %s130 = ssub.s32 %s25, %s34
      %s131 = sor.u32 %s129, %s130
      %s132 = ssub.s32 %s24, %s38
      %s133 = sor.u32 %s131, %s132
      %p134 = scmp.eq.s32.totalorder %s133, 0
      %s136 = sadd.s32 %s135, 1
      %s137 = scalar_select %p134, %s135, %s136
      %p140 = pneg %p134
      %p141 = scmp.eq.s32.totalorder %s16, 7
      %p142 = por %p140, %p141
      %p143 = scmp.ne.s32.totalorder %s135, %s138
      %p144 = scmp.eq.s32.totalorder %s16, 0
      %p145 = por %p143, %p144
      %p146 = scmp.ne.s32.totalorder %s135, %s138
      %p147 = scmp.eq.s32.totalorder %s21, 7
      %p148 = por %p146, %p147
      %p149 = scmp.ne.s32.totalorder %s138, %s139
      %p150 = scmp.eq.s32.totalorder %s21, 0
      %p151 = por %p149, %p150
      %p152 = scmp.ne.s32.totalorder %s138, %s139
      %p153 = scmp.eq.s32.totalorder %s22, 7
      %p154 = por %p152, %p153
      %p156 = scmp.ne.s32.totalorder %s139, %s155
      %p157 = scmp.eq.s32.totalorder %s22, 0
      %p158 = por %p156, %p157
      %s159 = ssub.s32 %s25, %s34
      %p160 = scmp.eq.s32.totalorder %s159, 0
      %s162 = sadd.s32 %s161, 1
      %s163 = scalar_select %p160, %s161, %s162
      %p166 = pneg %p160
      %p167 = scmp.eq.s32.totalorder %s16, 7
      %p168 = por %p166, %p167
      %p169 = scmp.ne.s32.totalorder %s161, %s164
      %p170 = scmp.eq.s32.totalorder %s16, 0
      %p171 = por %p169, %p170
      %p172 = scmp.ne.s32.totalorder %s161, %s164
      %p173 = scmp.eq.s32.totalorder %s21, 7
      %p174 = por %p172, %p173
      %p175 = scmp.ne.s32.totalorder %s164, %s165
      %p176 = scmp.eq.s32.totalorder %s21, 0
      %p177 = por %p175, %p176
      %p178 = scmp.ne.s32.totalorder %s164, %s165
      %p179 = scmp.eq.s32.totalorder %s22, 7
      %p180 = por %p178, %p179
      %p182 = scmp.ne.s32.totalorder %s165, %s181
      %p183 = scmp.eq.s32.totalorder %s22, 0
      %p184 = por %p182, %p183
      %s186 = sadd.s32 %s185, 1
      %p189 = scmp.eq.s32.totalorder %s16, 7
      %p190 = scmp.ne.s32.totalorder %s185, %s187
      %p191 = scmp.eq.s32.totalorder %s16, 0
      %p192 = por %p190, %p191
      %p193 = scmp.ne.s32.totalorder %s185, %s187
      %p194 = scmp.eq.s32.totalorder %s21, 7
      %p195 = por %p193, %p194
      %p196 = scmp.ne.s32.totalorder %s187, %s188
      %p197 = scmp.eq.s32.totalorder %s21, 0
      %p198 = por %p196, %p197
      %p199 = scmp.ne.s32.totalorder %s187, %s188
      %p200 = scmp.eq.s32.totalorder %s22, 7
      %p201 = por %p199, %p200
      %p203 = scmp.ne.s32.totalorder %s188, %s202
      %p204 = scmp.eq.s32.totalorder %s22, 0
      %p205 = por %p203, %p204
      %s206 = ssub.s32 %s23, %s42
      %s207 = ssub.s32 %s24, %s38
      %s208 = sor.u32 %s206, %s207
      %p209 = scmp.eq.s32.totalorder %s208, 0
      %s211 = sadd.s32 %s210, 1
      %s212 = scalar_select %p209, %s210, %s211
      %p215 = pneg %p209
      %p216 = scmp.eq.s32.totalorder %s16, 7
      %p217 = por %p215, %p216
      %p218 = scmp.ne.s32.totalorder %s210, %s213
      %p219 = scmp.eq.s32.totalorder %s16, 0
      %p220 = por %p218, %p219
      %p221 = scmp.ne.s32.totalorder %s210, %s213
      %p222 = scmp.eq.s32.totalorder %s21, 7
      %p223 = por %p221, %p222
      %p224 = scmp.ne.s32.totalorder %s213, %s214
      %p225 = scmp.eq.s32.totalorder %s21, 0
      %p226 = por %p224, %p225
      %p227 = scmp.ne.s32.totalorder %s213, %s214
      %p228 = scmp.eq.s32.totalorder %s22, 7
      %p229 = por %p227, %p228
      %p231 = scmp.ne.s32.totalorder %s214, %s230
      %p232 = scmp.eq.s32.totalorder %s22, 0
      %p233 = por %p231, %p232
      %s234 = ssub.s32 %s23, %s42
      %s235 = ssub.s32 %s24, %s38
      %s236 = sor.u32 %s234, %s235
      %p237 = scmp.eq.s32.totalorder %s236, 0
      %s239 = sadd.s32 %s238, 1
      %s240 = scalar_select %p237, %s238, %s239
      %p243 = pneg %p237
      %p244 = scmp.eq.s32.totalorder %s16, 7
      %p245 = por %p243, %p244
      %p246 = scmp.ne.s32.totalorder %s238, %s241
      %p247 = scmp.eq.s32.totalorder %s16, 0
      %p248 = por %p246, %p247
      %p249 = scmp.ne.s32.totalorder %s238, %s241
      %p250 = scmp.eq.s32.totalorder %s21, 7
      %p251 = por %p249, %p250
      %p252 = scmp.ne.s32.totalorder %s241, %s242
      %p253 = scmp.eq.s32.totalorder %s21, 0
      %p254 = por %p252, %p253
      %p255 = scmp.ne.s32.totalorder %s241, %s242
      %p256 = scmp.eq.s32.totalorder %s22, 7
      %p257 = por %p255, %p256
      %p259 = scmp.ne.s32.totalorder %s242, %s258
      %p260 = scmp.eq.s32.totalorder %s22, 0
      %p261 = por %p259, %p260
      %p262 = scmp.le.s32.totalorder 1, %s16
      %p263 = scmp.lt.s32.totalorder %s16, 9
      %p264 = pnand %p262, %p263
      %p265 = pneg %p264
      // Predicated region
      $region9: #{_lambda_.5} parent=5 // pred_check
        _
      $region10: #{_lambda_.5} parent=5 // pred_check_branch
        %267 = sbr.rel (%p264) target = $region12
      $region11: #{_lambda_.5} parent=5 // pred_region
        %s268 = ssub.s32 %s16, 1
        // Predicated region
        $region13: #{_lambda_.5} parent=11 // pred_check
          %p269 = pneg %p198
        $region14: #{_lambda_.5} parent=11 // pred_check_branch
          %271 = sbr.rel (%p269) target = $region16
        $region15: #{_lambda_.5} parent=11 // pred_region
          _
        $region16: #{_lambda_.5} parent=11 // pred_fallthru
          _
      $region12: #{_lambda_.5} parent=5 // pred_fallthru
        _
      %p272 = scmp.lt.s32.totalorder %s16, 8
      // Predicated region
      $region17: #{_lambda_.5} parent=5 // pred_check
        %p273 = pneg %p272
      $region18: #{_lambda_.5} parent=5 // pred_check_branch
        %275 = sbr.rel (%p273) target = $region20
      $region19: #{_lambda_.5} parent=5 // pred_region
        // Predicated region
        $region21: #{_lambda_.5} parent=19 // pred_check
          %p276 = pneg %p59
        $region22: #{_lambda_.5} parent=19 // pred_check_branch
          %278 = sbr.rel (%p276) target = $region24
        $region23: #{_lambda_.5} parent=19 // pred_region
          %s279 = smul.u32 2, %s24
          %p280 = scmp.lt.s32.totalorder %s23, 1
          %s281 = scalar_select %p280, %s23, 1
          %p282 = scmp.lt.s32.totalorder %s25, 3
          %s283 = scalar_select %p282, %s25, 3
          %p284 = scmp.lt.s32.totalorder %s279, 1
          %s285 = scalar_select %p284, %s279, 1
          %s286 = smul.addr %s283, 2
          %s287 = sadd.s32 %s285, %s286
          %s288 = smul.addr %s281, 8
          %s289 = sadd.s32 %s287, %s288
          %s290 = smul.addr %s289, 4
          %s291 = scalar_lea.vmem %s0, %s290
          %s292 = smul.u32 2, %s24
        $region24: #{_lambda_.5} parent=19 // pred_fallthru
          _
        // Predicated region
        $region25: #{_lambda_.5} parent=19 // pred_check
          %p293 = pneg %p87
        $region26: #{_lambda_.5} parent=19 // pred_check_branch
          %295 = sbr.rel (%p293) target = $region28
        $region27: #{_lambda_.5} parent=19 // pred_region
          %p296 = scmp.lt.s32.totalorder %s23, 1
          %s297 = scalar_select %p296, %s23, 1
          %p298 = scmp.lt.s32.totalorder %s25, 3
          %s299 = scalar_select %p298, %s25, 3
          %s300 = smul.addr %s299, 2
          %s301 = smul.addr %s297, 8
          %s302 = sadd.s32 %s300, %s301
          %s303 = smul.addr %s302, 4
          %s304 = scalar_lea.vmem %s1, %s303
        $region28: #{_lambda_.5} parent=19 // pred_fallthru
          _
        // Predicated region
        $region29: #{_lambda_.5} parent=19 // pred_check
          %p305 = pneg %p115
        $region30: #{_lambda_.5} parent=19 // pred_check_branch
          %307 = sbr.rel (%p305) target = $region32
        $region31: #{_lambda_.5} parent=19 // pred_region
          %p308 = scmp.lt.s32.totalorder %s23, 1
          %s309 = scalar_select %p308, %s23, 1
          %p310 = scmp.lt.s32.totalorder %s25, 3
          %s311 = scalar_select %p310, %s25, 3
          %s312 = smul.addr %s311, 2
          %s313 = smul.addr %s309, 8
          %s314 = sadd.s32 %s312, %s313
          %s315 = smul.addr %s314, 4
          %s316 = scalar_lea.vmem %s2, %s315
        $region32: #{_lambda_.5} parent=19 // pred_fallthru
          _
        // Predicated region
        $region33: #{_lambda_.5} parent=19 // pred_check
          %p317 = pneg %p145
        $region34: #{_lambda_.5} parent=19 // pred_check_branch
          %319 = sbr.rel (%p317) target = $region36
        $region35: #{_lambda_.5} parent=19 // pred_region
          %s320 = smul.u32 2, %s24
          %p321 = scmp.lt.s32.totalorder %s23, 1
          %s322 = scalar_select %p321, %s23, 1
          %p323 = scmp.lt.s32.totalorder %s25, 3
          %s324 = scalar_select %p323, %s25, 3
          %p325 = scmp.lt.s32.totalorder %s320, 1
          %s326 = scalar_select %p325, %s320, 1
          %s327 = smul.addr %s324, 2
          %s328 = sadd.s32 %s326, %s327
          %s329 = smul.addr %s322, 8
          %s330 = sadd.s32 %s328, %s329
          %s331 = smul.addr %s330, 4
          %s332 = scalar_lea.vmem %s3, %s331
          %s333 = smul.u32 2, %s24
        $region36: #{_lambda_.5} parent=19 // pred_fallthru
          _
        // Predicated region
        $region37: #{_lambda_.5} parent=19 // pred_check
          %p334 = pneg %p171
        $region38: #{_lambda_.5} parent=19 // pred_check_branch
          %336 = sbr.rel (%p334) target = $region40
        $region39: #{_lambda_.5} parent=19 // pred_region
          %p337 = scmp.lt.s32.totalorder %s25, 3
          %s338 = scalar_select %p337, %s25, 3
          %s339 = smul.addr %s338, 2
          %s340 = smul.addr %s339, 4
          %s341 = scalar_lea.vmem %s4, %s340
        $region40: #{_lambda_.5} parent=19 // pred_fallthru
          _
        // Predicated region
        $region41: #{_lambda_.5} parent=19 // pred_check
          %p342 = pneg %p220
        $region42: #{_lambda_.5} parent=19 // pred_check_branch
          %344 = sbr.rel (%p342) target = $region44
        $region43: #{_lambda_.5} parent=19 // pred_region
          %s345 = smul.u32 2, %s24
          %p346 = scmp.lt.s32.totalorder %s23, 1
          %s347 = scalar_select %p346, %s23, 1
          %p348 = scmp.lt.s32.totalorder %s345, 1
          %s349 = scalar_select %p348, %s345, 1
          %s350 = smul.addr %s347, 2
          %s351 = sadd.s32 %s349, %s350
          %s352 = smul.addr %s351, 8
          %s353 = scalar_lea.vmem %s6, %s352
          %s354 = smul.u32 2, %s24
        $region44: #{_lambda_.5} parent=19 // pred_fallthru
          _
      $region20: #{_lambda_.5} parent=5 // pred_fallthru
        _
      %p355 = scmp.le.s32.totalorder 1, %s16
      %p356 = scmp.lt.s32.totalorder %s16, 9
      %p357 = pnand %p355, %p356
      %p358 = pneg %p357
      // Predicated region
      $region45: #{_lambda_.5} parent=5 // pred_check
        _
      $region46: #{_lambda_.5} parent=5 // pred_check_branch
        %360 = sbr.rel (%p357) target = $region48
      $region47: #{_lambda_.5} parent=5 // pred_region
        %s361 = ssub.s32 %s16, 1
        %s362 = smul.u32 2, %s27
        %p363 = scmp.lt.s32.totalorder %s26, 1
        %s364 = scalar_select %p363, %s26, 1
        %p365 = scmp.lt.s32.totalorder %s28, 3
        %s366 = scalar_select %p365, %s28, 3
        %p367 = scmp.lt.s32.totalorder %s362, 1
        %s368 = scalar_select %p367, %s362, 1
        %s369 = smul.addr %s366, 2
        %s370 = sadd.s32 %s368, %s369
        %s371 = smul.addr %s364, 8
        %s372 = sadd.s32 %s370, %s371
        %s373 = smul.addr %s372, 4
        %s374 = scalar_lea.vmem %s0, %s373
        %p375 = pneg %p65
        %p376 = pneg %p62
        %p377 = scmp.lt.s32.totalorder %s26, 1
        %s378 = scalar_select %p377, %s26, 1
        %p379 = scmp.lt.s32.totalorder %s28, 3
        %s380 = scalar_select %p379, %s28, 3
        %s381 = smul.addr %s380, 2
        %s382 = smul.addr %s378, 8
        %s383 = sadd.s32 %s381, %s382
        %s384 = smul.addr %s383, 4
        %s385 = scalar_lea.vmem %s1, %s384
        %p386 = pneg %p93
        %p387 = pneg %p90
        %p388 = scmp.lt.s32.totalorder %s26, 1
        %s389 = scalar_select %p388, %s26, 1
        %p390 = scmp.lt.s32.totalorder %s28, 3
        %s391 = scalar_select %p390, %s28, 3
        %s392 = smul.addr %s391, 2
        %s393 = smul.addr %s389, 8
        %s394 = sadd.s32 %s392, %s393
        %s395 = smul.addr %s394, 4
        %s396 = scalar_lea.vmem %s2, %s395
        %p397 = pneg %p121
        %p398 = pneg %p118
        %s399 = smul.u32 2, %s27
        %p400 = scmp.lt.s32.totalorder %s26, 1
        %s401 = scalar_select %p400, %s26, 1
        %p402 = scmp.lt.s32.totalorder %s28, 3
        %s403 = scalar_select %p402, %s28, 3
        %p404 = scmp.lt.s32.totalorder %s399, 1
        %s405 = scalar_select %p404, %s399, 1
        %s406 = smul.addr %s403, 2
        %s407 = sadd.s32 %s405, %s406
        %s408 = smul.addr %s401, 8
        %s409 = sadd.s32 %s407, %s408
        %s410 = smul.addr %s409, 4
        %s411 = scalar_lea.vmem %s3, %s410
        %p412 = pneg %p151
        %p413 = pneg %p148
        %p414 = scmp.lt.s32.totalorder %s28, 3
        %s415 = scalar_select %p414, %s28, 3
        %s416 = smul.addr %s415, 2
        %s417 = smul.addr %s416, 4
        %s418 = scalar_lea.vmem %s4, %s417
        %p419 = pneg %p177
        %p420 = pneg %p174
        %p421 = pneg %p198
        %p422 = pneg %p195
        %s423 = smul.u32 2, %s27
        %p424 = scmp.lt.s32.totalorder %s26, 1
        %s425 = scalar_select %p424, %s26, 1
        %p426 = scmp.lt.s32.totalorder %s423, 1
        %s427 = scalar_select %p426, %s423, 1
        %s428 = smul.addr %s425, 2
        %s429 = sadd.s32 %s427, %s428
        %s430 = smul.addr %s429, 8
        %s431 = scalar_lea.vmem %s6, %s430
        %p432 = pneg %p226
        %p433 = pneg %p223
        %p434 = pneg %p254
        %p435 = pneg %p251
        %s436 = sand.u32 %s241, 1
        %s437 = scalar_lea.sflag [#allocation3], %s436
        %s438 = sand.u32 %s241, 1
        %s439 = smul.addr %s438, 16
        %s440 = scalar_lea.vmem [#allocation2], %s439
        %s441 = smul.u32 2, %s27
        %p442 = scmp.lt.s32.totalorder %s26, 1
        %s443 = scalar_select %p442, %s26, 1
        %p444 = scmp.lt.s32.totalorder %s28, 3
        %s445 = scalar_select %p444, %s28, 3
        %p446 = scmp.lt.s32.totalorder %s441, 1
        %s447 = scalar_select %p446, %s441, 1
        %s448 = smul.addr %s445, 2
        %s449 = sadd.s32 %s447, %s448
        %s450 = smul.addr %s443, 8
        %s451 = sadd.s32 %s449, %s450
        %s452 = smul.addr %s451, 4
        %s453 = scalar_lea.vmem %s0, %s452
        %s454 = smul.u32 2, %s27
        %p455 = scmp.lt.s32.totalorder %s26, 1
        %s456 = scalar_select %p455, %s26, 1
        %p457 = scmp.lt.s32.totalorder %s28, 3
        %s458 = scalar_select %p457, %s28, 3
        %s459 = smul.addr %s458, 2
        %s460 = smul.addr %s456, 8
        %s461 = sadd.s32 %s459, %s460
        %s462 = smul.addr %s461, 4
        %s463 = scalar_lea.vmem %s1, %s462
        %p464 = scmp.lt.s32.totalorder %s26, 1
        %s465 = scalar_select %p464, %s26, 1
        %p466 = scmp.lt.s32.totalorder %s28, 3
        %s467 = scalar_select %p466, %s28, 3
        %s468 = smul.addr %s467, 2
        %s469 = smul.addr %s465, 8
        %s470 = sadd.s32 %s468, %s469
        %s471 = smul.addr %s470, 4
        %s472 = scalar_lea.vmem %s2, %s471
        %s473 = smul.u32 2, %s27
        %p474 = scmp.lt.s32.totalorder %s26, 1
        %s475 = scalar_select %p474, %s26, 1
        %p476 = scmp.lt.s32.totalorder %s28, 3
        %s477 = scalar_select %p476, %s28, 3
        %p478 = scmp.lt.s32.totalorder %s473, 1
        %s479 = scalar_select %p478, %s473, 1
        %s480 = smul.addr %s477, 2
        %s481 = sadd.s32 %s479, %s480
        %s482 = smul.addr %s475, 8
        %s483 = sadd.s32 %s481, %s482
        %s484 = smul.addr %s483, 4
        %s485 = scalar_lea.vmem %s3, %s484
        %s486 = smul.u32 2, %s27
        %p487 = scmp.lt.s32.totalorder %s28, 3
        %s488 = scalar_select %p487, %s28, 3
        %s489 = smul.addr %s488, 2
        %s490 = smul.addr %s489, 4
        %s491 = scalar_lea.vmem %s4, %s490
        %s492 = smul.u32 2, %s27
        %p493 = scmp.lt.s32.totalorder %s26, 1
        %s494 = scalar_select %p493, %s26, 1
        %p495 = scmp.lt.s32.totalorder %s492, 1
        %s496 = scalar_select %p495, %s492, 1
        %s497 = smul.addr %s494, 2
        %s498 = sadd.s32 %s496, %s497
        %s499 = smul.addr %s498, 8
        %s500 = scalar_lea.vmem %s6, %s499
        %s501 = smul.u32 2, %s27
        %s502 = smul.u32 2, %s27
        %v504 = vld [vmem:[%s453] sm:$0xf]
        %v505 = vld [vmem:[%s453 + $0x4] sm:$0xf]
        %v506 = vld [vmem:[%s463] sm:$0xf]
        %v507 = vld [vmem:[%s463 + $0x4] sm:$0xf]
        %v508 = vld [vmem:[%s472] sm:$0xf]
        %v509 = vld [vmem:[%s472 + $0x4] sm:$0xf]
        %v510 = vld [vmem:[%s500] sm:$0xff]
        %v511 = vld [vmem:[%s500 + $0x8] sm:$0xff]
        %v514 = vunpack.c.l.b16 %v504
        %v515 = vunpack.c.l.b16 %v505
        %v516 = vpack.c.b16 %v515, %v514
        %v519 = vunpack.c.l.b16 %v506
        %v520 = vunpack.c.l.b16 %v507
        %v521 = vpack.c.b16 %v520, %v519
        %vm522 = vcmask 64512
        %v524 = vsel %vm522, %v516, 0
        %v527 = vsel %vm522, %v521, 0
        %529 = vmatprep.subr.bf16.mxu0 0
        %530 = vmatpush1.bf16.xpose.msra.mxu0 %v527
        %531 = vmatprep.subr.bf16.mxu0 0
        %532 = vmatpush1.bf16.xpose.msra.mxu0 0
        %533 = vmatprep.subr.bf16.mxu0 0
        %534 = vmatpush1.bf16.xpose.msra.mxu0 0
        %535 = vmatprep.subr.bf16.mxu0 0
        %536 = vmatpush1.bf16.xpose.msra.mxu0 0
        %537 = vmatprep.subr.bf16.mxu0 0
        %538 = vmatpush1.bf16.xpose.msra.mxu0 0
        %539 = vmatprep.subr.bf16.mxu0 0
        %540 = vmatpush1.bf16.xpose.msra.mxu0 0
        %541 = vmatprep.subr.bf16.mxu0 0
        %542 = vmatpush1.bf16.xpose.msra.mxu0 0
        %543 = vmatprep.subr.bf16.mxu0 0
        %544 = vmatpush1.bf16.xpose.msra.mxu0 0
        %545 = vmatprep.subr.bf16.mxu0 0
        %546 = vmatpush1.bf16.xpose.msra.mxu0 0
        %547 = vmatprep.subr.bf16.mxu0 0
        %548 = vmatpush1.bf16.xpose.msra.mxu0 0
        %549 = vmatprep.subr.bf16.mxu0 0
        %550 = vmatpush1.bf16.xpose.msra.mxu0 0
        %551 = vmatprep.subr.bf16.mxu0 0
        %552 = vmatpush1.bf16.xpose.msra.mxu0 0
        %553 = vmatprep.subr.bf16.mxu0 0
        %554 = vmatpush1.bf16.xpose.msra.mxu0 0
        %555 = vmatprep.subr.bf16.mxu0 0
        %556 = vmatpush1.bf16.xpose.msra.mxu0 0
        %557 = vmatprep.subr.bf16.mxu0 0
        %558 = vmatpush1.bf16.xpose.msra.mxu0 0
        %559 = vmatprep.subr.bf16.mxu0 0
        %560 = vmatpush1.bf16.xpose.msra.mxu0 0
        %561 = vmatprep.mubr.bf16.mxu0 0
        %562 = vmatmul.mubr.bf16.gmra.mrb[0].mxu0 %v524
        %v563 = vpop.f32.mrb[0].mxu0
        %v564 = vadd.f32 %v510, %v563
        %v565 = vpop.f32.mrb[0].mxu0
        %v566 = vpop.f32.mrb[0].mxu0
        %v567 = vadd.f32 %v511, %v566
        %v568 = vpop.f32.mrb[0].mxu0
        %569 = vdwg.mxu0
        %vm570 = vcmask 130048
        %v571 = vsel %vm570, %v564, -inf
        %572 = vmax.xlane.f32.xlu0 %v571
        %v573 = vpop.xlane.xlu0 %572
        %v574 = vsel %vm570, %v567, -inf
        %575 = vmax.xlane.f32.xlu0 %v574
        %v576 = vpop.xlane.xlu0 %575
        %v577 = vsub.f32 %v564, %v573
        %v578 = vsub.f32 %v567, %v576
        %v579 = vmul.f32 %v577, 1.442695
        %v580 = vpow.pop %v579
        %v581 = vmul.f32 %v578, 1.442695
        %v582 = vpow.pop %v581
        %v583 = vsel %vm570, %v580, 0.0
        %584 = vadd.xlane.f32.xlu0 %v583
        %v585 = vpop.xlane.xlu0 %584
        %v586 = vsel %vm570, %v582, 0.0
        %587 = vadd.xlane.f32.xlu0 %v586
        %v588 = vpop.xlane.xlu0 %587
        %v589 = vpack.c.bf16 %v582, %v580
        %v592 = vunpack.c.l.b16 %v508
        %v593 = vunpack.c.l.b16 %v509
        %v594 = vpack.c.b16 %v593, %v592
        %v597 = vsel %vm570, %v589, 0
        %599 = vmatprep.subr.bf16.mxu0 0
        %600 = vmatpush1.bf16.msra.mxu0 %v594
        %601 = vmatprep.subr.bf16.mxu0 0
        %602 = vmatpush1.bf16.msra.mxu0 0
        %603 = vmatprep.subr.bf16.mxu0 0
        %604 = vmatpush1.bf16.msra.mxu0 0
        %605 = vmatprep.subr.bf16.mxu0 0
        %606 = vmatpush1.bf16.msra.mxu0 0
        %607 = vmatprep.subr.bf16.mxu0 0
        %608 = vmatpush1.bf16.msra.mxu0 0
        %609 = vmatprep.subr.bf16.mxu0 0
        %610 = vmatpush1.bf16.msra.mxu0 0
        %611 = vmatprep.subr.bf16.mxu0 0
        %612 = vmatpush1.bf16.msra.mxu0 0
        %613 = vmatprep.subr.bf16.mxu0 0
        %614 = vmatpush1.bf16.msra.mxu0 0
        %615 = vmatprep.subr.bf16.mxu0 0
        %616 = vmatpush1.bf16.msra.mxu0 0
        %617 = vmatprep.subr.bf16.mxu0 0
        %618 = vmatpush1.bf16.msra.mxu0 0
        %619 = vmatprep.subr.bf16.mxu0 0
        %620 = vmatpush1.bf16.msra.mxu0 0
        %621 = vmatprep.subr.bf16.mxu0 0
        %622 = vmatpush1.bf16.msra.mxu0 0
        %623 = vmatprep.subr.bf16.mxu0 0
        %624 = vmatpush1.bf16.msra.mxu0 0
        %625 = vmatprep.subr.bf16.mxu0 0
        %626 = vmatpush1.bf16.msra.mxu0 0
        %627 = vmatprep.subr.bf16.mxu0 0
        %628 = vmatpush1.bf16.msra.mxu0 0
        %629 = vmatprep.subr.bf16.mxu0 0
        %630 = vmatpush1.bf16.msra.mxu0 0
        %631 = vmatprep.mubr.bf16.mxu0 0
        %632 = vmatmul.mubr.bf16.gmra.mrb[0].mxu0 %v597
        %v633 = vpop.f32.mrb[0].mxu0
        %v634 = vadd.f32 0.0, %v633
        %v635 = vpop.f32.mrb[0].mxu0
        %v636 = vpop.f32.mrb[0].mxu0
        %v637 = vadd.f32 0.0, %v636
        %v638 = vpop.f32.mrb[0].mxu0
        %639 = vdwg.mxu0
        %v640 = vrcp.pop %v585
        %v641 = vrcp.pop %v588
        %v642 = vmul.f32 %v634, %v640
        %v643 = vmul.f32 %v637, %v641
        %v644 = vpack.c.bf16 %v643, %v642
        %v645 = vld [vmem:[%s485] sm:$0xf]
        %v646 = vld [vmem:[%s485 + $0x4] sm:$0xf]
        %v649 = vunpack.c.l.b16 %v645
        %v650 = vunpack.c.l.b16 %v646
        %v651 = vpack.c.b16 %v650, %v649
        %v653 = vmul.bf16 %v644, %v651
        %v654 = vld [vmem:[%s491] sm:$0xf]
        %v655 = vld [vmem:[%s491 + $0x4] sm:$0xf]
        %v658 = vunpack.c.l.b16 %v654
        %v659 = vunpack.c.l.b16 %v655
        %v660 = vpack.c.b16 %v659, %v658
        %v662 = vsel %vm522, %v653, 0
        %v665 = vsel %vm522, %v660, 0
        %667 = vmatprep.subr.bf16.mxu0 0
        %668 = vmatpush1.bf16.xpose.msra.mxu0 %v665
        %669 = vmatprep.subr.bf16.mxu0 0
        %670 = vmatpush1.bf16.xpose.msra.mxu0 0
        %671 = vmatprep.subr.bf16.mxu0 0
        %672 = vmatpush1.bf16.xpose.msra.mxu0 0
        %673 = vmatprep.subr.bf16.mxu0 0
        %674 = vmatpush1.bf16.xpose.msra.mxu0 0
        %675 = vmatprep.subr.bf16.mxu0 0
        %676 = vmatpush1.bf16.xpose.msra.mxu0 0
        %677 = vmatprep.subr.bf16.mxu0 0
        %678 = vmatpush1.bf16.xpose.msra.mxu0 0
        %679 = vmatprep.subr.bf16.mxu0 0
        %680 = vmatpush1.bf16.xpose.msra.mxu0 0
        %681 = vmatprep.subr.bf16.mxu0 0
        %682 = vmatpush1.bf16.xpose.msra.mxu0 0
        %683 = vmatprep.subr.bf16.mxu0 0
        %684 = vmatpush1.bf16.xpose.msra.mxu0 0
        %685 = vmatprep.subr.bf16.mxu0 0
        %686 = vmatpush1.bf16.xpose.msra.mxu0 0
        %687 = vmatprep.subr.bf16.mxu0 0
        %688 = vmatpush1.bf16.xpose.msra.mxu0 0
        %689 = vmatprep.subr.bf16.mxu0 0
        %690 = vmatpush1.bf16.xpose.msra.mxu0 0
        %691 = vmatprep.subr.bf16.mxu0 0
        %692 = vmatpush1.bf16.xpose.msra.mxu0 0
        %693 = vmatprep.subr.bf16.mxu0 0
        %694 = vmatpush1.bf16.xpose.msra.mxu0 0
        %695 = vmatprep.subr.bf16.mxu0 0
        %696 = vmatpush1.bf16.xpose.msra.mxu0 0
        %697 = vmatprep.subr.bf16.mxu0 0
        %698 = vmatpush1.bf16.xpose.msra.mxu0 0
        %699 = vmatprep.mubr.bf16.mxu0 0
        %700 = vmatmul.mubr.bf16.gmra.mrb[0].mxu0 %v662
        %v701 = vpop.f32.mrb[0].mxu0
        %v702 = vadd.f32 0.0, %v701
        %v703 = vpop.f32.mrb[0].mxu0
        %v704 = vpop.f32.mrb[0].mxu0
        %v705 = vadd.f32 0.0, %v704
        %v706 = vpop.f32.mrb[0].mxu0
        %707 = vdwg.mxu0
        %p708 = scmp.eq.s32.totalorder %s28, 0
        // Predicated region
        $region49: #{_lambda_.5} parent=47 // pred_check
          %p709 = pneg %p708
        $region50: #{_lambda_.5} parent=47 // pred_check_branch
          %711 = sbr.rel (%p709) target = $region52
        $region51: #{_lambda_.5} parent=47 // pred_region
          %v712 = vld [vmem:[%s5] sm:$0x1]
          %v714 = vlaneseq
          %v715 = vshrl.u32 %v714, 7
          %v716 = vsub.s32 0, %v715
          %v717 = vrot.slane %v712, %v716
          %v719 = vadd.f32 %v717, %v702
          %v720 = vadd.f32 %v717, %v705
          %721 = vst.msk [vmem:[%s440] sm:$0xff] %vm570, %v719
          %722 = vst.msk [vmem:[%s440 + $0x8] sm:$0xff] %vm570, %v720
        $region52: #{_lambda_.5} parent=47 // pred_fallthru
          _
        %p723 = scmp.ne.s32.totalorder %s28, 0
        // Predicated region
        $region53: #{_lambda_.5} parent=47 // pred_check
          %p724 = pneg %p723
        $region54: #{_lambda_.5} parent=47 // pred_check_branch
          %726 = sbr.rel (%p724) target = $region56
        $region55: #{_lambda_.5} parent=47 // pred_region
          %v727 = vld [vmem:[%s440] sm:$0xff]
          %v728 = vld [vmem:[%s440 + $0x8] sm:$0xff]
          %v729 = vadd.f32 %v727, %v702
          %v730 = vadd.f32 %v728, %v705
          %731 = vst.msk [vmem:[%s440] sm:$0xff] %vm570, %v729
          %732 = vst.msk [vmem:[%s440 + $0x8] sm:$0xff] %vm570, %v730
        $region56: #{_lambda_.5} parent=47 // pred_fallthru
          _
        %s733 = sand.u32 %s241, 1
        %s734 = scalar_lea.sflag [#allocation3], %s733
        %s735 = sand.u32 %s241, 1
        %s736 = smul.addr %s735, 16
        %s737 = scalar_lea.vmem [#allocation2], %s736
        // Predicated region
        $region57: #{_lambda_.5} parent=47 // pred_check
          %p738 = pneg %p251
        $region58: #{_lambda_.5} parent=47 // pred_check_branch
          %740 = sbr.rel (%p738) target = $region60
        $region59: #{_lambda_.5} parent=47 // pred_region
          %s741 = smul.u32 2, %s27
          %s743 = ssub.s32 256, 256
          %744 = vsyncadd %s734, %s743
          %s745 = smul.addr %s26, 2
          %s746 = sadd.s32 %s741, %s745
          %s747 = smul.addr %s746, 128
          %s748 = scalar_lea.hbm %s7, %s747
          %s749 = sshll.u32 %s737, 4
          %s750 = int_to_ptr.vmem [resolvable:$true] %s749
          %755 = dma.vmem_to_hbm [thread:$0]  %s750, 256, %s748, %s734, 128, 128, 8
        $region60: #{_lambda_.5} parent=47 // pred_fallthru
          _
      $region48: #{_lambda_.5} parent=5 // pred_fallthru
        _
      %p756 = scmp.le.s32.totalorder 2, %s16
      // Predicated region
      $region61: #{_lambda_.5} parent=5 // pred_check
        %p757 = pneg %p756
      $region62: #{_lambda_.5} parent=5 // pred_check_branch
        %759 = sbr.rel (%p757) target = $region64
      $region63: #{_lambda_.5} parent=5 // pred_region
        %s760 = ssub.s32 %s16, 2
        // Predicated region
        $region65: #{_lambda_.5} parent=63 // pred_check
          %p761 = pneg %p257
        $region66: #{_lambda_.5} parent=63 // pred_check_branch
          %763 = sbr.rel (%p761) target = $region68
        $region67: #{_lambda_.5} parent=63 // pred_region
          %s764 = sand.u32 %s242, 1
          %s765 = scalar_lea.sflag [#allocation3], %s764
          %s766 = sand.u32 %s242, 1
          %s767 = smul.addr %s766, 16
          %s768 = scalar_lea.vmem [#allocation2], %s767
          %769 = dma.done %s765, 256
        $region68: #{_lambda_.5} parent=63 // pred_fallthru
          _
      $region64: #{_lambda_.5} parent=5 // pred_fallthru
        _
    $region6: #{_lambda_.5} parent=1 // loop_footer
      %s20 = sadd.s32 1, %s16
    $region7: #{_lambda_.5} parent=1 // loop_footer_branch
      %15 = sbr.rel target = $region3
    $region8: #{_lambda_.5} parent=1 // loop_exit
      _
    %770 = vsyncpa [#allocation3], 1
    %s771 = scalar_lea.sflag [#allocation3], 1
    %772 = vsyncpa %s771, 1

</llo_original>
